<compile_context>
chip_gen: v7x
topology: tpu7x:2x2x1
jax: 0.10.0
libtpu: 0.0.40
codegen_flags: <defaults>
</compile_context>

<pallas_src>
import math

import jax
import jax.numpy as jnp
from jax.experimental import pallas as pl
from jax.experimental.pallas import tpu as pltpu

LANE = 128


def _round_up(n: int, m: int) -> int:
    return (n + m - 1) // m * m


def _pad2d(a, rows, cols):
    return jnp.pad(a, ((0, rows - a.shape[0]), (0, cols - a.shape[1])))


# ----------------------------- kernel -----------------------------

def make_curvenet_kernel(tile_b: int, ncls_p: int, hid_p: int,
                         factor: float, out_bias: float):
    bf16 = jnp.bfloat16
    f32 = jnp.float32

    def kernel(x_ref, y_ref, emb_ref,
               bw1_ref, bw2_ref, bw3_ref, lw1_ref, lw2_ref, lw3_ref,
               bias_ref, lb3_ref, out_ref):
        # before_linear1 + relu   (bf16 operands, f32 MXU accumulation)
        h = jnp.dot(x_ref[...], bw1_ref[...], preferred_element_type=f32)
        h = jnp.maximum(h + bias_ref[0:1, :], 0.0)
        # before_linear2 + relu
        h = jnp.dot(h.astype(bf16), bw2_ref[...], preferred_element_type=f32)
        h = jnp.maximum(h + bias_ref[1:2, :], 0.0)
        # before_linear3; adaptive_avg_pool1d(out, hiddim) over a length-hiddim
        # signal is the identity map, so only the relu remains.
        h = jnp.dot(h.astype(bf16), bw3_ref[...], preferred_element_type=f32)
        h = jnp.maximum(h + bias_ref[2:3, 0:hid_p], 0.0)
        # class embedding folded in-kernel: one-hot(y) @ emb_table on the MXU.
        cls_iota = jax.lax.broadcasted_iota(jnp.int32, (tile_b, ncls_p), 1)
        onehot = (cls_iota == y_ref[...]).astype(bf16)
        y_emb = jnp.dot(onehot, emb_ref[...], preferred_element_type=f32)
        # out = out + y_emb; out = out + y_emb
        h = h + 2.0 * y_emb
        # linear1 + relu
        h = jnp.dot(h.astype(bf16), lw1_ref[...], preferred_element_type=f32)
        h = jnp.maximum(h + bias_ref[3:4, :], 0.0)
        # linear2 + relu
        h = jnp.dot(h.astype(bf16), lw2_ref[...], preferred_element_type=f32)
        h = jnp.maximum(h + bias_ref[4:5, 0:hid_p], 0.0)
        # linear3 (out dim = 1): VPU multiply + lane reduction (avoids an
        # M x K x 1 MXU pass); scalar bias comes from SMEM.
        o = jnp.sum(h * lw3_ref[...], axis=-1, keepdims=True) + lb3_ref[0, 0]
        # factor * sigmoid(o) + bias
        out_ref[...] = factor * jax.nn.sigmoid(o) + out_bias

    return kernel


# ----------------------------- wrapper -----------------------------

def curvenet_forward(x, y, packed, *, factor=5.0, out_bias=0.0, tile_b=128):
    """x: [B, input_dim] f32, y: [B] int32 class ids, packed: pack_curvenet_params()."""
    (emb_p, bw1, bw2, bw3, lw1, lw2, lw3_row, bias_all, lb3_s) = packed
    B = x.shape[0]
    dp = bw1.shape[0]
    hid2_p = bw1.shape[1]
    hid_p = bw3.shape[1]
    ncls_p = emb_p.shape[0]

    bp = _round_up(max(B, 1), tile_b)
    x_p = _pad2d(x.astype(jnp.float32), bp, dp).astype(jnp.bfloat16)
    y_p = jnp.pad(y.astype(jnp.int32).reshape(-1, 1), ((0, bp - B), (0, 0)))

    batch = lambda i: (i, 0)
    const = lambda i: (0, 0)

    out = pl.pallas_call(
        make_curvenet_kernel(tile_b, ncls_p, hid_p, float(factor), float(out_bias)),
        out_shape=jax.ShapeDtypeStruct((bp, 1), jnp.float32),
        grid=(bp // tile_b,),
        in_specs=[
            pl.BlockSpec((tile_b, dp), batch),      # x tile (pipelined)
            pl.BlockSpec((tile_b, 1), batch),       # class indices tile
            pl.BlockSpec((ncls_p, hid_p), const),   # embedding table (resident)
            pl.BlockSpec((dp, hid2_p), const),      # before_linear1.W
            pl.BlockSpec((hid2_p, hid2_p), const),  # before_linear2.W
            pl.BlockSpec((hid2_p, hid_p), const),   # before_linear3.W
            pl.BlockSpec((hid_p, hid2_p), const),   # linear1.W
            pl.BlockSpec((hid2_p, hid_p), const),   # linear2.W
            pl.BlockSpec((1, hid_p), const),        # linear3.W as an f32 row
            pl.BlockSpec((5, hid2_p), const),       # fused biases (f32)
            pl.BlockSpec(memory_space=pltpu.MemorySpace.SMEM),  # linear3.bias scalar
        ],
        out_specs=pl.BlockSpec((tile_b, 1), batch),
        compiler_params=pltpu.CompilerParams(
            dimension_semantics=("parallel",)),
    )(x_p, y_p, emb_p, bw1, bw2, bw3, lw1, lw2, lw3_row, bias_all, lb3_s)
    return out[:B]


# ------------------- deterministic parameter init -------------------

def init_curvenet_params(key, input_dim, hiddim, num_cls, actf="sigmoid"):
    """Weights are stored as [in, out] (transpose of PyTorch's [out, in])."""
    ks = jax.random.split(key, 8)

    def xavier_normal(k, fan_in, fan_out):
        std = math.sqrt(2.0 / (fan_in + fan_out))
        return std * jax.random.normal(k, (fan_in, fan_out), jnp.float32)

    def xavier_uniform(k, rows, cols):
        a = math.sqrt(6.0 / (rows + cols))
        return jax.random.uniform(k, (rows, cols), jnp.float32, minval=-a, maxval=a)

    bw1 = xavier_normal(ks[0], input_dim, hiddim * 2)
    bb1 = jnp.zeros((hiddim * 2,), jnp.float32)
    bw2 = xavier_normal(ks[1], hiddim * 2, hiddim * 2)
    bb2 = jnp.zeros((hiddim * 2,), jnp.float32)
    bw3 = xavier_normal(ks[2], hiddim * 2, hiddim)
    bb3 = jnp.zeros((hiddim,), jnp.float32)
    lw1 = xavier_normal(ks[3], hiddim, hiddim * 2)
    # linear1.bias is not zeroed in init_weight(); mimic nn.Linear's default.
    bound = 1.0 / math.sqrt(hiddim)
    lb1 = jax.random.uniform(ks[4], (hiddim * 2,), jnp.float32,
                             minval=-bound, maxval=bound)
    lw2 = xavier_normal(ks[5], hiddim * 2, hiddim)
    lb2 = jnp.zeros((hiddim,), jnp.float32)
    lw3 = xavier_normal(ks[6], hiddim, 1)
    lb3 = jnp.full((1,), 4.5 if actf == "sigmoid" else 1.0, jnp.float32)
    emb = xavier_uniform(ks[7], num_cls, hiddim)
    params = (bw1, bb1, bw2, bb2, bw3, bb3, lw1, lb1, lw2, lb2, lw3, lb3)
    return params, emb


def pack_curvenet_params(params, emb):
    """Lane-pad to multiples of 128, cast MXU weights to bf16, fuse biases."""
    bw1, bb1, bw2, bb2, bw3, bb3, lw1, lb1, lw2, lb2, lw3, lb3 = params
    input_dim, hid2 = bw1.shape
    hid = bw3.shape[1]
    num_cls = emb.shape[0]
    dp = _round_up(input_dim, LANE)
    hid2_p = _round_up(hid2, LANE)
    hid_p = _round_up(hid, LANE)
    ncls_p = _round_up(num_cls, LANE)
    bf16 = jnp.bfloat16

    bw1_p = _pad2d(bw1, dp, hid2_p).astype(bf16)
    bw2_p = _pad2d(bw2, hid2_p, hid2_p).astype(bf16)
    bw3_p = _pad2d(bw3, hid2_p, hid_p).astype(bf16)
    lw1_p = _pad2d(lw1, hid_p, hid2_p).astype(bf16)
    lw2_p = _pad2d(lw2, hid2_p, hid_p).astype(bf16)
    emb_p = _pad2d(emb, ncls_p, hid_p).astype(bf16)
    # Final layer runs on the VPU in f32: keep it as an f32 row vector.
    lw3_row = _pad2d(lw3.reshape(1, -1), 1, hid_p)

    def row(v):
        return jnp.pad(v, (0, hid2_p - v.shape[0])).reshape(1, hid2_p)

    bias_all = jnp.concatenate(
        [row(bb1), row(bb2), row(bb3), row(lb1), row(lb2)], axis=0)
    lb3_s = lb3.reshape(1, 1)
    return (emb_p, bw1_p, bw2_p, bw3_p, lw1_p, lw2_p, lw3_row, bias_all, lb3_s)


# ------------------ reference (pure JAX, same bf16 casts) ------------------

def curvenet_ref(x, y, params, emb, factor=5.0, out_bias=0.0):
    bw1, bb1, bw2, bb2, bw3, bb3, lw1, lb1, lw2, lb2, lw3, lb3 = params
    bf16 = jnp.bfloat16

    def dot(a, w):
        return jnp.dot(a.astype(bf16), w.astype(bf16),
                       preferred_element_type=jnp.float32)

    h = jnp.maximum(dot(x, bw1) + bb1, 0.0)
    h = jnp.maximum(dot(h, bw2) + bb2, 0.0)
    h = dot(h, bw3) + bb3
    h = jnp.maximum(h, 0.0)      # adaptive_avg_pool1d to hiddim == identity
    y_emb = jnp.take(emb.astype(bf16).astype(jnp.float32), y, axis=0)
    h = h + 2.0 * y_emb
    h = jnp.maximum(dot(h, lw1) + lb1, 0.0)
    h = jnp.maximum(dot(h, lw2) + lb2, 0.0)
    o = jnp.sum(h * lw3[:, 0][None, :], axis=-1, keepdims=True) + lb3
    return factor * jax.nn.sigmoid(o) + out_bias


if __name__ == "__main__":
    # Module-default feature shapes, batch big enough to exercise the grid.
    B, INPUT_DIM, HIDDIM, NUM_CLS = 256, 295, 64, 10
    FACTOR, OUT_BIAS = 5.0, 0.0
    TILE_B = 128

    key = jax.random.PRNGKey(0)
    kx, ky, kp = jax.random.split(key, 3)
    x = jax.random.normal(kx, (B, INPUT_DIM), jnp.float32)
    y = jax.random.randint(ky, (B,), 0, NUM_CLS, dtype=jnp.int32)

    params, emb = init_curvenet_params(kp, INPUT_DIM, HIDDIM, NUM_CLS, actf="sigmoid")
    packed = pack_curvenet_params(params, emb)

    out = curvenet_forward(x, y, packed, factor=FACTOR, out_bias=OUT_BIAS,
                           tile_b=TILE_B)
    out = jax.block_until_ready(out)

    ref = curvenet_ref(x, y, params, emb, FACTOR, OUT_BIAS)
    assert out.shape == (B, 1), out.shape
    assert bool(jnp.all(jnp.isfinite(out)))
    max_err = float(jnp.max(jnp.abs(out - ref)))
    assert jnp.allclose(out, ref, atol=2e-3, rtol=2e-3), max_err
    print("KERNEL_OK")
</pallas_src>

<mosaic_0001>
module attributes {stable_mosaic.version = 11 : i64} {
  func.func @kernel(%arg0: i32, %arg1: memref<128x384xbf16, #tpu.memory_space<vmem>>, %arg2: memref<128x1xi32, #tpu.memory_space<vmem>>, %arg3: memref<128x128xbf16, #tpu.memory_space<vmem>>, %arg4: memref<384x128xbf16, #tpu.memory_space<vmem>>, %arg5: memref<128x128xbf16, #tpu.memory_space<vmem>>, %arg6: memref<128x128xbf16, #tpu.memory_space<vmem>>, %arg7: memref<128x128xbf16, #tpu.memory_space<vmem>>, %arg8: memref<128x128xbf16, #tpu.memory_space<vmem>>, %arg9: memref<1x128xf32, #tpu.memory_space<vmem>>, %arg10: memref<5x128xf32, #tpu.memory_space<vmem>>, %arg11: memref<1x1xf32, #tpu.memory_space<smem>>, %arg12: memref<128x1xf32, #tpu.memory_space<vmem>>) attributes {dimension_semantics = [#tpu.dimension_semantics<parallel>], iteration_bounds = array<i64: 2>, scalar_prefetch = 0 : i64, scratch_operands = 0 : i64, tpu.core_type = #tpu.core_type<tc>, window_params = [{transform_indices = @transform_0, window_bounds = array<i64: 128, 384>}, {transform_indices = @transform_1, window_bounds = array<i64: 128, 1>}, {pipeline_mode = #tpu.pipeline_mode<synchronous>, transform_indices = @transform_2, window_bounds = array<i64: 128, 128>}, {pipeline_mode = #tpu.pipeline_mode<synchronous>, transform_indices = @transform_3, window_bounds = array<i64: 384, 128>}, {pipeline_mode = #tpu.pipeline_mode<synchronous>, transform_indices = @transform_4, window_bounds = array<i64: 128, 128>}, {pipeline_mode = #tpu.pipeline_mode<synchronous>, transform_indices = @transform_5, window_bounds = array<i64: 128, 128>}, {pipeline_mode = #tpu.pipeline_mode<synchronous>, transform_indices = @transform_6, window_bounds = array<i64: 128, 128>}, {pipeline_mode = #tpu.pipeline_mode<synchronous>, transform_indices = @transform_7, window_bounds = array<i64: 128, 128>}, {pipeline_mode = #tpu.pipeline_mode<synchronous>, transform_indices = @transform_8, window_bounds = array<i64: 1, 128>}, {pipeline_mode = #tpu.pipeline_mode<synchronous>, transform_indices = @transform_9, window_bounds = array<i64: 5, 128>}, {transform_indices = @transform_10, window_bounds = array<i64: 1, 1>}, {transform_indices = @transform_11, window_bounds = array<i64: 128, 1>}]} {
    %c0 = arith.constant 0 : index
    %c0_0 = arith.constant 0 : index
    %0 = vector.load %arg1[%c0, %c0_0] : memref<128x384xbf16, #tpu.memory_space<vmem>>, vector<128x384xbf16>
    %c0_1 = arith.constant 0 : index
    %c0_2 = arith.constant 0 : index
    %1 = vector.load %arg4[%c0_1, %c0_2] : memref<384x128xbf16, #tpu.memory_space<vmem>>, vector<384x128xbf16>
    %cst = arith.constant dense<0.000000e+00> : vector<128x128xf32>
    %2 = tpu.matmul %0, %1, %cst {dimension_numbers = #tpu.dot_dimension_numbers<[1], [0], [0], [1], [0, 0, 1, 1], [], []>} : vector<128x384xbf16>, vector<384x128xbf16>, vector<128x128xf32> -> vector<128x128xf32>
    %c0_3 = arith.constant 0 : index
    %c0_4 = arith.constant 0 : index
    %3 = vector.load %arg10[%c0_3, %c0_4] : memref<5x128xf32, #tpu.memory_space<vmem>>, vector<1x128xf32>
    %4 = vector.broadcast %3 : vector<1x128xf32> to vector<128x128xf32>
    %5 = arith.addf %2, %4 : vector<128x128xf32>
    %cst_5 = arith.constant 0.000000e+00 : f32
    %6 = vector.broadcast %cst_5 : f32 to vector<128x128xf32>
    %7 = arith.maximumf %5, %6 : vector<128x128xf32>
    %8 = arith.truncf %7 : vector<128x128xf32> to vector<128x128xbf16>
    %c0_6 = arith.constant 0 : index
    %c0_7 = arith.constant 0 : index
    %9 = vector.load %arg5[%c0_6, %c0_7] : memref<128x128xbf16, #tpu.memory_space<vmem>>, vector<128x128xbf16>
    %cst_8 = arith.constant dense<0.000000e+00> : vector<128x128xf32>
    %10 = tpu.matmul %8, %9, %cst_8 {dimension_numbers = #tpu.dot_dimension_numbers<[1], [0], [0], [1], [0, 0, 1, 1], [], []>} : vector<128x128xbf16>, vector<128x128xbf16>, vector<128x128xf32> -> vector<128x128xf32>
    %c1 = arith.constant 1 : index
    %c0_9 = arith.constant 0 : index
    %11 = vector.load %arg10[%c1, %c0_9] : memref<5x128xf32, #tpu.memory_space<vmem>>, vector<1x128xf32>
    %12 = vector.broadcast %11 : vector<1x128xf32> to vector<128x128xf32>
    %13 = arith.addf %10, %12 : vector<128x128xf32>
    %cst_10 = arith.constant 0.000000e+00 : f32
    %14 = vector.broadcast %cst_10 : f32 to vector<128x128xf32>
    %15 = arith.maximumf %13, %14 : vector<128x128xf32>
    %16 = arith.truncf %15 : vector<128x128xf32> to vector<128x128xbf16>
    %c0_11 = arith.constant 0 : index
    %c0_12 = arith.constant 0 : index
    %17 = vector.load %arg6[%c0_11, %c0_12] : memref<128x128xbf16, #tpu.memory_space<vmem>>, vector<128x128xbf16>
    %cst_13 = arith.constant dense<0.000000e+00> : vector<128x128xf32>
    %18 = tpu.matmul %16, %17, %cst_13 {dimension_numbers = #tpu.dot_dimension_numbers<[1], [0], [0], [1], [0, 0, 1, 1], [], []>} : vector<128x128xbf16>, vector<128x128xbf16>, vector<128x128xf32> -> vector<128x128xf32>
    %c2 = arith.constant 2 : index
    %c0_14 = arith.constant 0 : index
    %19 = vector.load %arg10[%c2, %c0_14] : memref<5x128xf32, #tpu.memory_space<vmem>>, vector<1x128xf32>
    %20 = vector.broadcast %19 : vector<1x128xf32> to vector<128x128xf32>
    %21 = arith.addf %18, %20 : vector<128x128xf32>
    %cst_15 = arith.constant 0.000000e+00 : f32
    %22 = vector.broadcast %cst_15 : f32 to vector<128x128xf32>
    %23 = arith.maximumf %21, %22 : vector<128x128xf32>
    %24 = tpu.iota {dimensions = array<i32: 1>} : vector<128x128xi32>
    %c0_16 = arith.constant 0 : index
    %c0_17 = arith.constant 0 : index
    %25 = vector.load %arg2[%c0_16, %c0_17] : memref<128x1xi32, #tpu.memory_space<vmem>>, vector<128x1xi32>
    %26 = vector.broadcast %25 : vector<128x1xi32> to vector<128x128xi32>
    %27 = arith.cmpi eq, %24, %26 : vector<128x128xi32>
    %28 = arith.extui %27 : vector<128x128xi1> to vector<128x128xi32>
    %29 = arith.sitofp %28 : vector<128x128xi32> to vector<128x128xf32>
    %30 = arith.truncf %29 : vector<128x128xf32> to vector<128x128xbf16>
    %c0_18 = arith.constant 0 : index
    %c0_19 = arith.constant 0 : index
    %31 = vector.load %arg3[%c0_18, %c0_19] : memref<128x128xbf16, #tpu.memory_space<vmem>>, vector<128x128xbf16>
    %cst_20 = arith.constant dense<0.000000e+00> : vector<128x128xf32>
    %32 = tpu.matmul %30, %31, %cst_20 {dimension_numbers = #tpu.dot_dimension_numbers<[1], [0], [0], [1], [0, 0, 1, 1], [], []>} : vector<128x128xbf16>, vector<128x128xbf16>, vector<128x128xf32> -> vector<128x128xf32>
    %cst_21 = arith.constant 2.000000e+00 : f32
    %33 = vector.broadcast %cst_21 : f32 to vector<128x128xf32>
    %34 = arith.mulf %33, %32 : vector<128x128xf32>
    %35 = arith.addf %23, %34 : vector<128x128xf32>
    %36 = arith.truncf %35 : vector<128x128xf32> to vector<128x128xbf16>
    %c0_22 = arith.constant 0 : index
    %c0_23 = arith.constant 0 : index
    %37 = vector.load %arg7[%c0_22, %c0_23] : memref<128x128xbf16, #tpu.memory_space<vmem>>, vector<128x128xbf16>
    %cst_24 = arith.constant dense<0.000000e+00> : vector<128x128xf32>
    %38 = tpu.matmul %36, %37, %cst_24 {dimension_numbers = #tpu.dot_dimension_numbers<[1], [0], [0], [1], [0, 0, 1, 1], [], []>} : vector<128x128xbf16>, vector<128x128xbf16>, vector<128x128xf32> -> vector<128x128xf32>
    %c3 = arith.constant 3 : index
    %c0_25 = arith.constant 0 : index
    %39 = vector.load %arg10[%c3, %c0_25] : memref<5x128xf32, #tpu.memory_space<vmem>>, vector<1x128xf32>
    %40 = vector.broadcast %39 : vector<1x128xf32> to vector<128x128xf32>
    %41 = arith.addf %38, %40 : vector<128x128xf32>
    %cst_26 = arith.constant 0.000000e+00 : f32
    %42 = vector.broadcast %cst_26 : f32 to vector<128x128xf32>
    %43 = arith.maximumf %41, %42 : vector<128x128xf32>
    %44 = arith.truncf %43 : vector<128x128xf32> to vector<128x128xbf16>
    %c0_27 = arith.constant 0 : index
    %c0_28 = arith.constant 0 : index
    %45 = vector.load %arg8[%c0_27, %c0_28] : memref<128x128xbf16, #tpu.memory_space<vmem>>, vector<128x128xbf16>
    %cst_29 = arith.constant dense<0.000000e+00> : vector<128x128xf32>
    %46 = tpu.matmul %44, %45, %cst_29 {dimension_numbers = #tpu.dot_dimension_numbers<[1], [0], [0], [1], [0, 0, 1, 1], [], []>} : vector<128x128xbf16>, vector<128x128xbf16>, vector<128x128xf32> -> vector<128x128xf32>
    %c4 = arith.constant 4 : index
    %c0_30 = arith.constant 0 : index
    %47 = vector.load %arg10[%c4, %c0_30] : memref<5x128xf32, #tpu.memory_space<vmem>>, vector<1x128xf32>
    %48 = vector.broadcast %47 : vector<1x128xf32> to vector<128x128xf32>
    %49 = arith.addf %46, %48 : vector<128x128xf32>
    %cst_31 = arith.constant 0.000000e+00 : f32
    %50 = vector.broadcast %cst_31 : f32 to vector<128x128xf32>
    %51 = arith.maximumf %49, %50 : vector<128x128xf32>
    %c0_32 = arith.constant 0 : index
    %c0_33 = arith.constant 0 : index
    %52 = vector.load %arg9[%c0_32, %c0_33] : memref<1x128xf32, #tpu.memory_space<vmem>>, vector<1x128xf32>
    %53 = vector.broadcast %52 : vector<1x128xf32> to vector<128x128xf32>
    %54 = arith.mulf %51, %53 : vector<128x128xf32>
    %cst_34 = arith.constant dense<0.000000e+00> : vector<128xf32>
    %55 = vector.multi_reduction <add>, %54, %cst_34 [1] : vector<128x128xf32> to vector<128xf32>
    %56 = vector.shape_cast %55 : vector<128xf32> to vector<128x1xf32>
    %c0_35 = arith.constant 0 : index
    %c0_36 = arith.constant 0 : index
    %57 = memref.load %arg11[%c0_35, %c0_36] : memref<1x1xf32, #tpu.memory_space<smem>>
    %58 = vector.broadcast %57 : f32 to vector<128x1xf32>
    %59 = arith.addf %56, %58 : vector<128x1xf32>
    %60 = arith.negf %59 : vector<128x1xf32>
    %61 = math.exp %60 : vector<128x1xf32>
    %cst_37 = arith.constant 1.000000e+00 : f32
    %62 = vector.broadcast %cst_37 : f32 to vector<128x1xf32>
    %63 = arith.addf %62, %61 : vector<128x1xf32>
    %64 = arith.divf %62, %63 : vector<128x1xf32>
    %cst_38 = arith.constant 5.000000e+00 : f32
    %65 = vector.broadcast %cst_38 : f32 to vector<128x1xf32>
    %66 = arith.mulf %65, %64 : vector<128x1xf32>
    %cst_39 = arith.constant 0.000000e+00 : f32
    %67 = vector.broadcast %cst_39 : f32 to vector<128x1xf32>
    %68 = arith.addf %66, %67 : vector<128x1xf32>
    %c0_40 = arith.constant 0 : index
    %c0_41 = arith.constant 0 : index
    %69 = vector.load %arg12[%c0_40, %c0_41] : memref<128x1xf32, #tpu.memory_space<vmem>>, vector<128x1xf32>
    tpu.vector_store %arg12[%c0_40, %c0_41], %68 {strides = array<i32>} : memref<128x1xf32, #tpu.memory_space<vmem>>, vector<128x1xf32>,
    return
  }
  func.func @transform_0(%arg0: i32) -> (i32, i32) {
    %c0_i32 = arith.constant 0 : i32
    %c0_i32_0 = arith.constant 0 : i32
    return %arg0, %c0_i32 : i32, i32
  }
  func.func @transform_1(%arg0: i32) -> (i32, i32) {
    %c0_i32 = arith.constant 0 : i32
    %c0_i32_0 = arith.constant 0 : i32
    return %arg0, %c0_i32 : i32, i32
  }
  func.func @transform_2(%arg0: i32) -> (i32, i32) {
    %c0_i32 = arith.constant 0 : i32
    %c0_i32_0 = arith.constant 0 : i32
    %c0_i32_1 = arith.constant 0 : i32
    return %c0_i32, %c0_i32_0 : i32, i32
  }
  func.func @transform_3(%arg0: i32) -> (i32, i32) {
    %c0_i32 = arith.constant 0 : i32
    %c0_i32_0 = arith.constant 0 : i32
    %c0_i32_1 = arith.constant 0 : i32
    return %c0_i32, %c0_i32_0 : i32, i32
  }
  func.func @transform_4(%arg0: i32) -> (i32, i32) {
    %c0_i32 = arith.constant 0 : i32
    %c0_i32_0 = arith.constant 0 : i32
    %c0_i32_1 = arith.constant 0 : i32
    return %c0_i32, %c0_i32_0 : i32, i32
  }
  func.func @transform_5(%arg0: i32) -> (i32, i32) {
    %c0_i32 = arith.constant 0 : i32
    %c0_i32_0 = arith.constant 0 : i32
    %c0_i32_1 = arith.constant 0 : i32
    return %c0_i32, %c0_i32_0 : i32, i32
  }
  func.func @transform_6(%arg0: i32) -> (i32, i32) {
    %c0_i32 = arith.constant 0 : i32
    %c0_i32_0 = arith.constant 0 : i32
    %c0_i32_1 = arith.constant 0 : i32
    return %c0_i32, %c0_i32_0 : i32, i32
  }
  func.func @transform_7(%arg0: i32) -> (i32, i32) {
    %c0_i32 = arith.constant 0 : i32
    %c0_i32_0 = arith.constant 0 : i32
    %c0_i32_1 = arith.constant 0 : i32
    return %c0_i32, %c0_i32_0 : i32, i32
  }
  func.func @transform_8(%arg0: i32) -> (i32, i32) {
    %c0_i32 = arith.constant 0 : i32
    %c0_i32_0 = arith.constant 0 : i32
    %c0_i32_1 = arith.constant 0 : i32
    return %c0_i32, %c0_i32_0 : i32, i32
  }
  func.func @transform_9(%arg0: i32) -> (i32, i32) {
    %c0_i32 = arith.constant 0 : i32
    %c0_i32_0 = arith.constant 0 : i32
    %c0_i32_1 = arith.constant 0 : i32
    return %c0_i32, %c0_i32_0 : i32, i32
  }
  func.func @transform_10(%arg0: i32) -> (i32, i32) {
    %c0_i32 = arith.constant 0 : i32
    %c0_i32_0 = arith.constant 0 : i32
    %c0_i32_1 = arith.constant 0 : i32
    return %c0_i32, %c0_i32_0 : i32, i32
  }
  func.func @transform_11(%arg0: i32) -> (i32, i32) {
    %c0_i32 = arith.constant 0 : i32
    %c0_i32_0 = arith.constant 0 : i32
    return %arg0, %c0_i32 : i32, i32
  }
}

</mosaic_0001>

<llo_original>
// kernel: tpu_custom_call.1
$region0: #{tpu_custom_call.1}
  #allocation0 [shape = 'u32[]', space=smem, size = 0x4, offset = 0x4, fixed_abs, tag = 'smem constant byte address 0x4 - core index']
  #allocation1 [shape = 'u32[144,128]{1,0:T(1,128)}', space=vmem, size = 0x12000, scoped, tag = 'internal scratch']
  #allocation2 [shape = 'f32[1,1]{1,0:T(1,128)S(6)}', space=smem, size = 0x200, scoped, tag = 'scoped memory for tpu_custom_call.1']
  %s0 = inlined_call_operand.hbm [shape: bf16[256,384], index: 0, kind: input, shape index: {}]
  %s1 = inlined_call_operand.vmem [shape: s32[256,1], index: 1, kind: input, shape index: {}]
  %s2 = inlined_call_operand.vmem [shape: bf16[128,128], index: 2, kind: input, shape index: {}]
  %s3 = inlined_call_operand.vmem [shape: bf16[384,128], index: 3, kind: input, shape index: {}]
  %s4 = inlined_call_operand.hbm [shape: bf16[128,128], index: 4, kind: input, shape index: {}]
  %s5 = inlined_call_operand.hbm [shape: bf16[128,128], index: 5, kind: input, shape index: {}]
  %s6 = inlined_call_operand.hbm [shape: bf16[128,128], index: 6, kind: input, shape index: {}]
  %s7 = inlined_call_operand.hbm [shape: bf16[128,128], index: 7, kind: input, shape index: {}]
  %s8 = inlined_call_operand.vmem [shape: f32[1,128], index: 8, kind: input, shape index: {}]
  %s9 = inlined_call_operand.vmem [shape: f32[5,128], index: 9, kind: input, shape index: {}]
  %s10 = inlined_call_operand.<no memory space> [shape: f32[1,1], index: 10, kind: input, shape index: {}]
  %s11 = inlined_call_operand.vmem [shape: f32[256,1], index: 11, kind: output, shape index: {}]
  %s12 = sld [smem:[#allocation0]]
  $region97: #{tpu_custom_call.1} parent=0
    _
  %s14 = ssub.s32 1, %s12
  %s15 = scalar_select 0, %s14, %s12
  %16 = sst [smem:[#allocation2]] %s10
  $region1: #{tpu_custom_call.1} parent=0
    #allocation3 [shape = 'u8[196608]{0}', space=vmem, size = 0x30000, scoped, tag = 'input window, operand 0']
    #allocation4 [shape = 's32[2]{0}', space=sflag, size = 0x8, scoped, tag = 'scoped memory for tpu_custom_call.1']
    #allocation5 [shape = 'u8[32768]{0}', space=vmem, size = 0x8000, scoped, tag = 'input window, operand 4, single buffered']
    #allocation6 [shape = 's32[1]{0}', space=sflag, size = 0x4, scoped, tag = 'scoped memory for tpu_custom_call.1']
    #allocation7 [shape = 'u8[32768]{0}', space=vmem, size = 0x8000, scoped, tag = 'input window, operand 5, single buffered']
    #allocation8 [shape = 'u8[32768]{0}', space=vmem, size = 0x8000, scoped, tag = 'input window, operand 6, single buffered']
    #allocation9 [shape = 's32[1]{0}', space=sflag, size = 0x4, scoped, tag = 'scoped memory for tpu_custom_call.1']
    #allocation10 [shape = 'u8[32768]{0}', space=vmem, size = 0x8000, scoped, tag = 'input window, operand 7, single buffered']
    %17 = vsyncpa [#allocation4], 0
    %s18 = scalar_lea.sflag [#allocation4], 1
    %19 = vsyncpa %s18, 0
    %20 = vsyncpa [#allocation6], 0
    %21 = vsyncpa [#allocation9], 0
    loop: start=0, step=1, limit=4
    $region2: #{tpu_custom_call.1} parent=1 // loop_pre_header
      _
    $region3: #{tpu_custom_call.1} parent=1 // loop_header
      %s23 = sphi 0, %s27
      %p24 = scmp.ge.s32.totalorder %s23, 4
      %s33 = sphi 0, %s35
      %s36 = sphi 0, %s33
      %s37 = sphi 0, %s36
      %s53 = sphi 0, %s37
      %s59 = sphi 0, %s61
      %s62 = sphi 0, %s59
      %s63 = sphi 0, %s62
      %s79 = sphi 0, %s63
      %s83 = sphi 0, %s83
      %s85 = sphi 0, %s83
      %s86 = sphi 0, %s85
      %s100 = sphi 0, %s86
      %s104 = sphi 0, %s104
      %s106 = sphi 0, %s104
      %s107 = sphi 0, %s106
      %s121 = sphi 0, %s107
      %s125 = sphi 0, %s125
      %s127 = sphi 0, %s125
      %s128 = sphi 0, %s127
      %s142 = sphi 0, %s128
      %s146 = sphi 0, %s146
      %s148 = sphi 0, %s146
      %s149 = sphi 0, %s148
      %s163 = sphi 0, %s149
      %s167 = sphi 0, %s167
      %s169 = sphi 0, %s167
      %s170 = sphi 0, %s169
      %s184 = sphi 0, %s170
      %s188 = sphi 0, %s188
      %s190 = sphi 0, %s188
      %s191 = sphi 0, %s190
      %s205 = sphi 0, %s191
      %s209 = sphi 0, %s209
      %s211 = sphi 0, %s209
      %s212 = sphi 0, %s211
      %s226 = sphi 0, %s212
      %s230 = sphi 0, %s230
      %s232 = sphi 0, %s230
      %s233 = sphi 0, %s232
      %s247 = sphi 0, %s233
      %s251 = sphi 0, %s251
      %s253 = sphi 0, %s251
      %s254 = sphi 0, %s253
      %s268 = sphi 0, %s254
      %s274 = sphi 0, %s276
      %s277 = sphi 0, %s274
      %s278 = sphi 0, %s277
      %s294 = sphi 0, %s278
    $region4: #{tpu_custom_call.1} parent=1 // loop_header_branch
      %26 = sbr.rel (%p24) target = $region8
    $region5: #{tpu_custom_call.1} parent=1 // loop_body
      %s28 = ssub.s32 %s23, 1
      %s29 = ssub.s32 %s23, 2
      %s30 = sadd.s32 %s23, 1
      %s31 = ssub.s32 %s23, %s30
      %p32 = scmp.eq.s32.totalorder %s31, 0
      %s34 = sadd.s32 %s33, 1
      %s35 = scalar_select %p32, %s33, %s34
      %p38 = pneg %p32
      %p39 = scmp.eq.s32.totalorder %s23, 1
      %p40 = por %p38, %p39
      %p41 = scmp.ne.s32.totalorder %s33, %s36
      %p42 = scmp.eq.s32.totalorder %s23, 0
      %p43 = por %p41, %p42
      %p44 = scmp.ne.s32.totalorder %s33, %s36
      %p45 = scmp.eq.s32.totalorder %s28, 1
      %p46 = por %p44, %p45
      %p47 = scmp.ne.s32.totalorder %s36, %s37
      %p48 = scmp.eq.s32.totalorder %s28, 0
      %p49 = por %p47, %p48
      %p50 = scmp.ne.s32.totalorder %s36, %s37
      %p51 = scmp.eq.s32.totalorder %s29, 1
      %p52 = por %p50, %p51
      %p54 = scmp.ne.s32.totalorder %s37, %s53
      %p55 = scmp.eq.s32.totalorder %s29, 0
      %p56 = por %p54, %p55
      %s57 = ssub.s32 %s23, %s30
      %p58 = scmp.eq.s32.totalorder %s57, 0
      %s60 = sadd.s32 %s59, 1
      %s61 = scalar_select %p58, %s59, %s60
      %p64 = pneg %p58
      %p65 = scmp.eq.s32.totalorder %s23, 1
      %p66 = por %p64, %p65
      %p67 = scmp.ne.s32.totalorder %s59, %s62
      %p68 = scmp.eq.s32.totalorder %s23, 0
      %p69 = por %p67, %p68
      %p70 = scmp.ne.s32.totalorder %s59, %s62
      %p71 = scmp.eq.s32.totalorder %s28, 1
      %p72 = por %p70, %p71
      %p73 = scmp.ne.s32.totalorder %s62, %s63
      %p74 = scmp.eq.s32.totalorder %s28, 0
      %p75 = por %p73, %p74
      %p76 = scmp.ne.s32.totalorder %s62, %s63
      %p77 = scmp.eq.s32.totalorder %s29, 1
      %p78 = por %p76, %p77
      %p80 = scmp.ne.s32.totalorder %s63, %s79
      %p81 = scmp.eq.s32.totalorder %s29, 0
      %p82 = por %p80, %p81
      %s84 = sadd.s32 %s83, 1
      %p87 = scmp.eq.s32.totalorder %s23, 1
      %p88 = scmp.ne.s32.totalorder %s83, %s85
      %p89 = scmp.eq.s32.totalorder %s23, 0
      %p90 = por %p88, %p89
      %p91 = scmp.ne.s32.totalorder %s83, %s85
      %p92 = scmp.eq.s32.totalorder %s28, 1
      %p93 = por %p91, %p92
      %p94 = scmp.ne.s32.totalorder %s85, %s86
      %p95 = scmp.eq.s32.totalorder %s28, 0
      %p96 = por %p94, %p95
      %p97 = scmp.ne.s32.totalorder %s85, %s86
      %p98 = scmp.eq.s32.totalorder %s29, 1
      %p99 = por %p97, %p98
      %p101 = scmp.ne.s32.totalorder %s86, %s100
      %p102 = scmp.eq.s32.totalorder %s29, 0
      %p103 = por %p101, %p102
      %s105 = sadd.s32 %s104, 1
      %p108 = scmp.eq.s32.totalorder %s23, 1
      %p109 = scmp.ne.s32.totalorder %s104, %s106
      %p110 = scmp.eq.s32.totalorder %s23, 0
      %p111 = por %p109, %p110
      %p112 = scmp.ne.s32.totalorder %s104, %s106
      %p113 = scmp.eq.s32.totalorder %s28, 1
      %p114 = por %p112, %p113
      %p115 = scmp.ne.s32.totalorder %s106, %s107
      %p116 = scmp.eq.s32.totalorder %s28, 0
      %p117 = por %p115, %p116
      %p118 = scmp.ne.s32.totalorder %s106, %s107
      %p119 = scmp.eq.s32.totalorder %s29, 1
      %p120 = por %p118, %p119
      %p122 = scmp.ne.s32.totalorder %s107, %s121
      %p123 = scmp.eq.s32.totalorder %s29, 0
      %p124 = por %p122, %p123
      %s126 = sadd.s32 %s125, 1
      %p129 = scmp.eq.s32.totalorder %s23, 1
      %p130 = scmp.ne.s32.totalorder %s125, %s127
      %p131 = scmp.eq.s32.totalorder %s23, 0
      %p132 = por %p130, %p131
      %p133 = scmp.ne.s32.totalorder %s125, %s127
      %p134 = scmp.eq.s32.totalorder %s28, 1
      %p135 = por %p133, %p134
      %p136 = scmp.ne.s32.totalorder %s127, %s128
      %p137 = scmp.eq.s32.totalorder %s28, 0
      %p138 = por %p136, %p137
      %p139 = scmp.ne.s32.totalorder %s127, %s128
      %p140 = scmp.eq.s32.totalorder %s29, 1
      %p141 = por %p139, %p140
      %p143 = scmp.ne.s32.totalorder %s128, %s142
      %p144 = scmp.eq.s32.totalorder %s29, 0
      %p145 = por %p143, %p144
      %s147 = sadd.s32 %s146, 1
      %p150 = scmp.eq.s32.totalorder %s23, 1
      %p151 = scmp.ne.s32.totalorder %s146, %s148
      %p152 = scmp.eq.s32.totalorder %s23, 0
      %p153 = por %p151, %p152
      %p154 = scmp.ne.s32.totalorder %s146, %s148
      %p155 = scmp.eq.s32.totalorder %s28, 1
      %p156 = por %p154, %p155
      %p157 = scmp.ne.s32.totalorder %s148, %s149
      %p158 = scmp.eq.s32.totalorder %s28, 0
      %p159 = por %p157, %p158
      %p160 = scmp.ne.s32.totalorder %s148, %s149
      %p161 = scmp.eq.s32.totalorder %s29, 1
      %p162 = por %p160, %p161
      %p164 = scmp.ne.s32.totalorder %s149, %s163
      %p165 = scmp.eq.s32.totalorder %s29, 0
      %p166 = por %p164, %p165
      %s168 = sadd.s32 %s167, 1
      %p171 = scmp.eq.s32.totalorder %s23, 1
      %p172 = scmp.ne.s32.totalorder %s167, %s169
      %p173 = scmp.eq.s32.totalorder %s23, 0
      %p174 = por %p172, %p173
      %p175 = scmp.ne.s32.totalorder %s167, %s169
      %p176 = scmp.eq.s32.totalorder %s28, 1
      %p177 = por %p175, %p176
      %p178 = scmp.ne.s32.totalorder %s169, %s170
      %p179 = scmp.eq.s32.totalorder %s28, 0
      %p180 = por %p178, %p179
      %p181 = scmp.ne.s32.totalorder %s169, %s170
      %p182 = scmp.eq.s32.totalorder %s29, 1
      %p183 = por %p181, %p182
      %p185 = scmp.ne.s32.totalorder %s170, %s184
      %p186 = scmp.eq.s32.totalorder %s29, 0
      %p187 = por %p185, %p186
      %s189 = sadd.s32 %s188, 1
      %p192 = scmp.eq.s32.totalorder %s23, 1
      %p193 = scmp.ne.s32.totalorder %s188, %s190
      %p194 = scmp.eq.s32.totalorder %s23, 0
      %p195 = por %p193, %p194
      %p196 = scmp.ne.s32.totalorder %s188, %s190
      %p197 = scmp.eq.s32.totalorder %s28, 1
      %p198 = por %p196, %p197
      %p199 = scmp.ne.s32.totalorder %s190, %s191
      %p200 = scmp.eq.s32.totalorder %s28, 0
      %p201 = por %p199, %p200
      %p202 = scmp.ne.s32.totalorder %s190, %s191
      %p203 = scmp.eq.s32.totalorder %s29, 1
      %p204 = por %p202, %p203
      %p206 = scmp.ne.s32.totalorder %s191, %s205
      %p207 = scmp.eq.s32.totalorder %s29, 0
      %p208 = por %p206, %p207
      %s210 = sadd.s32 %s209, 1
      %p213 = scmp.eq.s32.totalorder %s23, 1
      %p214 = scmp.ne.s32.totalorder %s209, %s211
      %p215 = scmp.eq.s32.totalorder %s23, 0
      %p216 = por %p214, %p215
      %p217 = scmp.ne.s32.totalorder %s209, %s211
      %p218 = scmp.eq.s32.totalorder %s28, 1
      %p219 = por %p217, %p218
      %p220 = scmp.ne.s32.totalorder %s211, %s212
      %p221 = scmp.eq.s32.totalorder %s28, 0
      %p222 = por %p220, %p221
      %p223 = scmp.ne.s32.totalorder %s211, %s212
      %p224 = scmp.eq.s32.totalorder %s29, 1
      %p225 = por %p223, %p224
      %p227 = scmp.ne.s32.totalorder %s212, %s226
      %p228 = scmp.eq.s32.totalorder %s29, 0
      %p229 = por %p227, %p228
      %s231 = sadd.s32 %s230, 1
      %p234 = scmp.eq.s32.totalorder %s23, 1
      %p235 = scmp.ne.s32.totalorder %s230, %s232
      %p236 = scmp.eq.s32.totalorder %s23, 0
      %p237 = por %p235, %p236
      %p238 = scmp.ne.s32.totalorder %s230, %s232
      %p239 = scmp.eq.s32.totalorder %s28, 1
      %p240 = por %p238, %p239
      %p241 = scmp.ne.s32.totalorder %s232, %s233
      %p242 = scmp.eq.s32.totalorder %s28, 0
      %p243 = por %p241, %p242
      %p244 = scmp.ne.s32.totalorder %s232, %s233
      %p245 = scmp.eq.s32.totalorder %s29, 1
      %p246 = por %p244, %p245
      %p248 = scmp.ne.s32.totalorder %s233, %s247
      %p249 = scmp.eq.s32.totalorder %s29, 0
      %p250 = por %p248, %p249
      %s252 = sadd.s32 %s251, 1
      %p255 = scmp.eq.s32.totalorder %s23, 1
      %p256 = scmp.ne.s32.totalorder %s251, %s253
      %p257 = scmp.eq.s32.totalorder %s23, 0
      %p258 = por %p256, %p257
      %p259 = scmp.ne.s32.totalorder %s251, %s253
      %p260 = scmp.eq.s32.totalorder %s28, 1
      %p261 = por %p259, %p260
      %p262 = scmp.ne.s32.totalorder %s253, %s254
      %p263 = scmp.eq.s32.totalorder %s28, 0
      %p264 = por %p262, %p263
      %p265 = scmp.ne.s32.totalorder %s253, %s254
      %p266 = scmp.eq.s32.totalorder %s29, 1
      %p267 = por %p265, %p266
      %p269 = scmp.ne.s32.totalorder %s254, %s268
      %p270 = scmp.eq.s32.totalorder %s29, 0
      %p271 = por %p269, %p270
      %s272 = ssub.s32 %s23, %s30
      %p273 = scmp.eq.s32.totalorder %s272, 0
      %s275 = sadd.s32 %s274, 1
      %s276 = scalar_select %p273, %s274, %s275
      %p279 = pneg %p273
      %p280 = scmp.eq.s32.totalorder %s23, 1
      %p281 = por %p279, %p280
      %p282 = scmp.ne.s32.totalorder %s274, %s277
      %p283 = scmp.eq.s32.totalorder %s23, 0
      %p284 = por %p282, %p283
      %p285 = scmp.ne.s32.totalorder %s274, %s277
      %p286 = scmp.eq.s32.totalorder %s28, 1
      %p287 = por %p285, %p286
      %p288 = scmp.ne.s32.totalorder %s277, %s278
      %p289 = scmp.eq.s32.totalorder %s28, 0
      %p290 = por %p288, %p289
      %p291 = scmp.ne.s32.totalorder %s277, %s278
      %p292 = scmp.eq.s32.totalorder %s29, 1
      %p293 = por %p291, %p292
      %p295 = scmp.ne.s32.totalorder %s278, %s294
      %p296 = scmp.eq.s32.totalorder %s29, 0
      %p297 = por %p295, %p296
      %p298 = scmp.le.s32.totalorder 1, %s23
      %p299 = scmp.lt.s32.totalorder %s23, 3
      %p300 = pnand %p298, %p299
      %p301 = pneg %p300
      // Predicated region
      $region9: #{tpu_custom_call.1} parent=5 // pred_check
        _
      $region10: #{tpu_custom_call.1} parent=5 // pred_check_branch
        %303 = sbr.rel (%p300) target = $region12
      $region11: #{tpu_custom_call.1} parent=5 // pred_region
        %s304 = ssub.s32 %s23, 1
        // Predicated region
        $region13: #{tpu_custom_call.1} parent=11 // pred_check
          %p305 = pneg %p96
        $region14: #{tpu_custom_call.1} parent=11 // pred_check_branch
          %307 = sbr.rel (%p305) target = $region16
        $region15: #{tpu_custom_call.1} parent=11 // pred_region
          _
        $region16: #{tpu_custom_call.1} parent=11 // pred_fallthru
          _
        // Predicated region
        $region17: #{tpu_custom_call.1} parent=11 // pred_check
          %p308 = pneg %p117
        $region18: #{tpu_custom_call.1} parent=11 // pred_check_branch
          %310 = sbr.rel (%p308) target = $region20
        $region19: #{tpu_custom_call.1} parent=11 // pred_region
          _
        $region20: #{tpu_custom_call.1} parent=11 // pred_fallthru
          _
        // Predicated region
        $region21: #{tpu_custom_call.1} parent=11 // pred_check
          %p311 = pneg %p138
        $region22: #{tpu_custom_call.1} parent=11 // pred_check_branch
          %313 = sbr.rel (%p311) target = $region24
        $region23: #{tpu_custom_call.1} parent=11 // pred_region
          %s315 = ssub.s32 1024, 1024
          %316 = vsyncadd [#allocation6], %s315
          %s317 = sshll.u32 [#allocation5], 4
          %s318 = int_to_ptr.vmem [resolvable:$true] %s317
          %323 = dma.hbm_to_vmem [thread:$0]  %s4, 1024, %s318, [#allocation6], 64, 64, 4
        $region24: #{tpu_custom_call.1} parent=11 // pred_fallthru
          _
        // Predicated region
        $region25: #{tpu_custom_call.1} parent=11 // pred_check
          %p324 = pneg %p159
        $region26: #{tpu_custom_call.1} parent=11 // pred_check_branch
          %326 = sbr.rel (%p324) target = $region28
        $region27: #{tpu_custom_call.1} parent=11 // pred_region
          %s328 = ssub.s32 1024, 1024
          %329 = vsyncadd [#allocation6], %s328
          %s330 = sshll.u32 [#allocation7], 4
          %s331 = int_to_ptr.vmem [resolvable:$true] %s330
          %336 = dma.hbm_to_vmem [thread:$0]  %s5, 1024, %s331, [#allocation6], 64, 64, 4
        $region28: #{tpu_custom_call.1} parent=11 // pred_fallthru
          _
        // Predicated region
        $region29: #{tpu_custom_call.1} parent=11 // pred_check
          %p337 = pneg %p180
        $region30: #{tpu_custom_call.1} parent=11 // pred_check_branch
          %339 = sbr.rel (%p337) target = $region32
        $region31: #{tpu_custom_call.1} parent=11 // pred_region
          %s341 = ssub.s32 1024, 1024
          %342 = vsyncadd [#allocation9], %s341
          %s343 = sshll.u32 [#allocation8], 4
          %s344 = int_to_ptr.vmem [resolvable:$true] %s343
          %349 = dma.hbm_to_vmem [thread:$0]  %s6, 1024, %s344, [#allocation9], 64, 64, 4
        $region32: #{tpu_custom_call.1} parent=11 // pred_fallthru
          _
        // Predicated region
        $region33: #{tpu_custom_call.1} parent=11 // pred_check
          %p350 = pneg %p201
        $region34: #{tpu_custom_call.1} parent=11 // pred_check_branch
          %352 = sbr.rel (%p350) target = $region36
        $region35: #{tpu_custom_call.1} parent=11 // pred_region
          %s354 = ssub.s32 1024, 1024
          %355 = vsyncadd [#allocation9], %s354
          %s356 = sshll.u32 [#allocation10], 4
          %s357 = int_to_ptr.vmem [resolvable:$true] %s356
          %362 = dma.hbm_to_vmem [thread:$0]  %s7, 1024, %s357, [#allocation9], 64, 64, 4
        $region36: #{tpu_custom_call.1} parent=11 // pred_fallthru
          _
        // Predicated region
        $region37: #{tpu_custom_call.1} parent=11 // pred_check
          %p363 = pneg %p222
        $region38: #{tpu_custom_call.1} parent=11 // pred_check_branch
          %365 = sbr.rel (%p363) target = $region40
        $region39: #{tpu_custom_call.1} parent=11 // pred_region
          _
        $region40: #{tpu_custom_call.1} parent=11 // pred_fallthru
          _
        // Predicated region
        $region41: #{tpu_custom_call.1} parent=11 // pred_check
          %p366 = pneg %p243
        $region42: #{tpu_custom_call.1} parent=11 // pred_check_branch
          %368 = sbr.rel (%p366) target = $region44
        $region43: #{tpu_custom_call.1} parent=11 // pred_region
          _
        $region44: #{tpu_custom_call.1} parent=11 // pred_fallthru
          _
        // Predicated region
        $region45: #{tpu_custom_call.1} parent=11 // pred_check
          %p369 = pneg %p264
        $region46: #{tpu_custom_call.1} parent=11 // pred_check_branch
          %371 = sbr.rel (%p369) target = $region48
        $region47: #{tpu_custom_call.1} parent=11 // pred_region
          _
        $region48: #{tpu_custom_call.1} parent=11 // pred_fallthru
          _
      $region12: #{tpu_custom_call.1} parent=5 // pred_fallthru
        _
      %p372 = scmp.lt.s32.totalorder %s23, 2
      // Predicated region
      $region49: #{tpu_custom_call.1} parent=5 // pred_check
        %p373 = pneg %p372
      $region50: #{tpu_custom_call.1} parent=5 // pred_check_branch
        %375 = sbr.rel (%p373) target = $region52
      $region51: #{tpu_custom_call.1} parent=5 // pred_region
        // Predicated region
        $region53: #{tpu_custom_call.1} parent=51 // pred_check
          %p376 = pneg %p43
        $region54: #{tpu_custom_call.1} parent=51 // pred_check_branch
          %378 = sbr.rel (%p376) target = $region56
        $region55: #{tpu_custom_call.1} parent=51 // pred_region
          %s379 = sand.u32 %s33, 1
          %s380 = scalar_lea.sflag [#allocation4], %s379
          %s381 = sand.u32 %s33, 1
          %s382 = smul.addr %s381, 192
          %s383 = scalar_lea.vmem [#allocation3], %s382
          %s384 = smul.u32 16, %s23
          %s386 = ssub.s32 3072, 3072
          %387 = vsyncadd %s380, %s386
          %s388 = smul.addr %s384, 3
          %s389 = smul.addr %s388, 64
          %s390 = scalar_lea.hbm %s0, %s389
          %s391 = sshll.u32 %s383, 4
          %s392 = int_to_ptr.vmem [resolvable:$true] %s391
          %397 = dma.hbm_to_vmem [thread:$0]  %s390, 3072, %s392, %s380, 192, 192, 12
        $region56: #{tpu_custom_call.1} parent=51 // pred_fallthru
          _
        // Predicated region
        $region57: #{tpu_custom_call.1} parent=51 // pred_check
          %p398 = pneg %p69
        $region58: #{tpu_custom_call.1} parent=51 // pred_check_branch
          %400 = sbr.rel (%p398) target = $region60
        $region59: #{tpu_custom_call.1} parent=51 // pred_region
          %s401 = smul.u32 16, %s23
          %p402 = scmp.lt.s32.totalorder %s401, 31
          %s403 = scalar_select %p402, %s401, 31
          %s404 = smul.addr %s403, 8
          %s405 = scalar_lea.vmem %s1, %s404
          %s406 = smul.u32 16, %s23
        $region60: #{tpu_custom_call.1} parent=51 // pred_fallthru
          _
      $region52: #{tpu_custom_call.1} parent=5 // pred_fallthru
        _
      %p407 = scmp.le.s32.totalorder 1, %s23
      %p408 = scmp.lt.s32.totalorder %s23, 3
      %p409 = pnand %p407, %p408
      %p410 = pneg %p409
      // Predicated region
      $region61: #{tpu_custom_call.1} parent=5 // pred_check
        _
      $region62: #{tpu_custom_call.1} parent=5 // pred_check_branch
        %412 = sbr.rel (%p409) target = $region64
      $region63: #{tpu_custom_call.1} parent=5 // pred_region
        %s413 = ssub.s32 %s23, 1
        %s414 = sand.u32 %s36, 1
        %s415 = scalar_lea.sflag [#allocation4], %s414
        %s416 = sand.u32 %s36, 1
        %s417 = smul.addr %s416, 192
        %s418 = scalar_lea.vmem [#allocation3], %s417
        // Predicated region
        $region65: #{tpu_custom_call.1} parent=63 // pred_check
          %p419 = pneg %p49
        $region66: #{tpu_custom_call.1} parent=63 // pred_check_branch
          %421 = sbr.rel (%p419) target = $region68
        $region67: #{tpu_custom_call.1} parent=63 // pred_region
          %422 = dma.done %s415, 3072
        $region68: #{tpu_custom_call.1} parent=63 // pred_fallthru
          _
        // Predicated region
        $region69: #{tpu_custom_call.1} parent=63 // pred_check
          %p423 = pneg %p138
        $region70: #{tpu_custom_call.1} parent=63 // pred_check_branch
          %425 = sbr.rel (%p423) target = $region72
        $region71: #{tpu_custom_call.1} parent=63 // pred_region
          %426 = dma.done [#allocation6], 1024
        $region72: #{tpu_custom_call.1} parent=63 // pred_fallthru
          _
        // Predicated region
        $region73: #{tpu_custom_call.1} parent=63 // pred_check
          %p427 = pneg %p159
        $region74: #{tpu_custom_call.1} parent=63 // pred_check_branch
          %429 = sbr.rel (%p427) target = $region76
        $region75: #{tpu_custom_call.1} parent=63 // pred_region
          %430 = dma.done [#allocation6], 1024
        $region76: #{tpu_custom_call.1} parent=63 // pred_fallthru
          _
        // Predicated region
        $region77: #{tpu_custom_call.1} parent=63 // pred_check
          %p431 = pneg %p180
        $region78: #{tpu_custom_call.1} parent=63 // pred_check_branch
          %433 = sbr.rel (%p431) target = $region80
        $region79: #{tpu_custom_call.1} parent=63 // pred_region
          %434 = dma.done [#allocation9], 1024
        $region80: #{tpu_custom_call.1} parent=63 // pred_fallthru
          _
        // Predicated region
        $region81: #{tpu_custom_call.1} parent=63 // pred_check
          %p435 = pneg %p201
        $region82: #{tpu_custom_call.1} parent=63 // pred_check_branch
          %437 = sbr.rel (%p435) target = $region84
        $region83: #{tpu_custom_call.1} parent=63 // pred_region
          %438 = dma.done [#allocation9], 1024
        $region84: #{tpu_custom_call.1} parent=63 // pred_fallthru
          _
        %s439 = sand.u32 %s36, 1
        %s440 = scalar_lea.sflag [#allocation4], %s439
        %s441 = sand.u32 %s36, 1
        %s442 = smul.addr %s441, 192
        %s443 = scalar_lea.vmem [#allocation3], %s442
        %p444 = pneg %p49
        %p445 = pneg %p46
        %s446 = smul.u32 16, %s28
        %p447 = scmp.lt.s32.totalorder %s446, 31
        %s448 = scalar_select %p447, %s446, 31
        %s449 = smul.addr %s448, 8
        %s450 = scalar_lea.vmem %s1, %s449
        %p451 = pneg %p75
        %p452 = pneg %p72
        %p453 = pneg %p96
        %p454 = pneg %p93
        %p455 = pneg %p117
        %p456 = pneg %p114
        %p457 = pneg %p138
        %p458 = pneg %p135
        %p459 = pneg %p159
        %p460 = pneg %p156
        %p461 = pneg %p180
        %p462 = pneg %p177
        %p463 = pneg %p201
        %p464 = pneg %p198
        %p465 = pneg %p222
        %p466 = pneg %p219
        %p467 = pneg %p243
        %p468 = pneg %p240
        %p469 = pneg %p264
        %p470 = pneg %p261
        %p471 = pneg %p290
        %p472 = pneg %p287
        %s473 = smul.u32 16, %s28
        %p474 = scmp.lt.s32.totalorder %s473, 31
        %s475 = scalar_select %p474, %s473, 31
        %s476 = smul.addr %s475, 8
        %s477 = scalar_lea.vmem %s11, %s476
        %s478 = smul.u32 16, %s28
        %s479 = smul.u32 16, %s28
        %p480 = scmp.lt.s32.totalorder %s479, 31
        %s481 = scalar_select %p480, %s479, 31
        %s482 = smul.addr %s481, 8
        %s483 = scalar_lea.vmem %s1, %s482
        %s484 = smul.u32 16, %s28
        %s485 = smul.u32 16, %s28
        %p486 = scmp.lt.s32.totalorder %s485, 31
        %s487 = scalar_select %p486, %s485, 31
        %s488 = smul.addr %s487, 8
        %s489 = scalar_lea.vmem %s11, %s488
        %s490 = smul.u32 16, %s28
        %v492 = vld [vmem:[%s418] sm:$0xff]
        %v493 = vld [vmem:[%s418 + $0x8] sm:$0xf]
        %v494 = vld [vmem:[%s418 + $0xc] sm:$0xff]
        %v495 = vld [vmem:[%s418 + $0x14] sm:$0xf]
        %v496 = vld [vmem:[%s418 + $0x18] sm:$0xff]
        %v497 = vld [vmem:[%s418 + $0x20] sm:$0xf]
        %v498 = vld [vmem:[%s418 + $0x24] sm:$0xff]
        %v499 = vld [vmem:[%s418 + $0x2c] sm:$0xf]
        %v500 = vld [vmem:[%s418 + $0x30] sm:$0xff]
        %v501 = vld [vmem:[%s418 + $0x38] sm:$0xf]
        %v502 = vld [vmem:[%s418 + $0x3c] sm:$0xff]
        %v503 = vld [vmem:[%s418 + $0x44] sm:$0xf]
        %v504 = vld [vmem:[%s418 + $0x48] sm:$0xff]
        %v505 = vld [vmem:[%s418 + $0x50] sm:$0xf]
        %v506 = vld [vmem:[%s418 + $0x54] sm:$0xff]
        %v507 = vld [vmem:[%s418 + $0x5c] sm:$0xf]
        %v508 = vld [vmem:[%s418 + $0x60] sm:$0xff]
        %v509 = vld [vmem:[%s418 + $0x68] sm:$0xf]
        %v510 = vld [vmem:[%s418 + $0x6c] sm:$0xff]
        %v511 = vld [vmem:[%s418 + $0x74] sm:$0xf]
        %v512 = vld [vmem:[%s418 + $0x78] sm:$0xff]
        %v513 = vld [vmem:[%s418 + $0x80] sm:$0xf]
        %v514 = vld [vmem:[%s418 + $0x84] sm:$0xff]
        %v515 = vld [vmem:[%s418 + $0x8c] sm:$0xf]
        %v516 = vld [vmem:[%s418 + $0x90] sm:$0xff]
        %v517 = vld [vmem:[%s418 + $0x98] sm:$0xf]
        %v518 = vld [vmem:[%s418 + $0x9c] sm:$0xff]
        %v519 = vld [vmem:[%s418 + $0xa4] sm:$0xf]
        %v520 = vld [vmem:[%s418 + $0xa8] sm:$0xff]
        %v521 = vld [vmem:[%s418 + $0xb0] sm:$0xf]
        %v522 = vld [vmem:[%s418 + $0xb4] sm:$0xff]
        %v523 = vld [vmem:[%s418 + $0xbc] sm:$0xf]
        %v524 = vld [vmem:[%s3] sm:$0xf]
        %v525 = vld [vmem:[%s3 + $0x4] sm:$0xf]
        %v526 = vld [vmem:[%s3 + $0x8] sm:$0xf]
        %v527 = vld [vmem:[%s3 + $0xc] sm:$0xf]
        %v528 = vld [vmem:[%s3 + $0x10] sm:$0xf]
        %v529 = vld [vmem:[%s3 + $0x14] sm:$0xf]
        %v530 = vld [vmem:[%s3 + $0x18] sm:$0xf]
        %v531 = vld [vmem:[%s3 + $0x1c] sm:$0xf]
        %v532 = vld [vmem:[%s3 + $0x20] sm:$0xf]
        %v533 = vld [vmem:[%s3 + $0x24] sm:$0xf]
        %v534 = vld [vmem:[%s3 + $0x28] sm:$0xf]
        %v535 = vld [vmem:[%s3 + $0x2c] sm:$0xf]
        %v536 = vld [vmem:[%s3 + $0x30] sm:$0xf]
        %v537 = vld [vmem:[%s3 + $0x34] sm:$0xf]
        %v538 = vld [vmem:[%s3 + $0x38] sm:$0xf]
        %v539 = vld [vmem:[%s3 + $0x3c] sm:$0xf]
        %v540 = vld [vmem:[%s3 + $0x40] sm:$0xf]
        %v541 = vld [vmem:[%s3 + $0x44] sm:$0xf]
        %v542 = vld [vmem:[%s3 + $0x48] sm:$0xf]
        %v543 = vld [vmem:[%s3 + $0x4c] sm:$0xf]
        %v544 = vld [vmem:[%s3 + $0x50] sm:$0xf]
        %v545 = vld [vmem:[%s3 + $0x54] sm:$0xf]
        %v546 = vld [vmem:[%s3 + $0x58] sm:$0xf]
        %v547 = vld [vmem:[%s3 + $0x5c] sm:$0xf]
        %v548 = vld [vmem:[%s3 + $0x60] sm:$0xf]
        %v549 = vld [vmem:[%s3 + $0x64] sm:$0xf]
        %v550 = vld [vmem:[%s3 + $0x68] sm:$0xf]
        %v551 = vld [vmem:[%s3 + $0x6c] sm:$0xf]
        %v552 = vld [vmem:[%s3 + $0x70] sm:$0xf]
        %v553 = vld [vmem:[%s3 + $0x74] sm:$0xf]
        %v554 = vld [vmem:[%s3 + $0x78] sm:$0xf]
        %v555 = vld [vmem:[%s3 + $0x7c] sm:$0xf]
        %v556 = vld [vmem:[%s3 + $0x80] sm:$0xf]
        %v557 = vld [vmem:[%s3 + $0x84] sm:$0xf]
        %v558 = vld [vmem:[%s3 + $0x88] sm:$0xf]
        %v559 = vld [vmem:[%s3 + $0x8c] sm:$0xf]
        %v560 = vld [vmem:[%s3 + $0x90] sm:$0xf]
        %v561 = vld [vmem:[%s3 + $0x94] sm:$0xf]
        %v562 = vld [vmem:[%s3 + $0x98] sm:$0xf]
        %v563 = vld [vmem:[%s3 + $0x9c] sm:$0xf]
        %v564 = vld [vmem:[%s3 + $0xa0] sm:$0xf]
        %v565 = vld [vmem:[%s3 + $0xa4] sm:$0xf]
        %v566 = vld [vmem:[%s3 + $0xa8] sm:$0xf]
        %v567 = vld [vmem:[%s3 + $0xac] sm:$0xf]
        %v568 = vld [vmem:[%s3 + $0xb0] sm:$0xf]
        %v569 = vld [vmem:[%s3 + $0xb4] sm:$0xf]
        %v570 = vld [vmem:[%s3 + $0xb8] sm:$0xf]
        %v571 = vld [vmem:[%s3 + $0xbc] sm:$0xf]
        %v572 = vld [vmem:[%s9] sm:$0x1]
        %v573 = vlaneseq
        %v574 = vshrl.u32 %v573, 7
        %v575 = vsub.s32 0, %v574
        %v576 = vrot.slane %v572, %v575
        %v609 = vunpack.c.l.b16 %v492
        %v610 = vunpack.c.h.b16 %v492
        %v611 = vunpack.c.l.b16 %v493
        %v612 = vunpack.c.l.b16 %v494
        %v613 = vunpack.c.h.b16 %v494
        %v614 = vunpack.c.l.b16 %v495
        %v615 = vunpack.c.l.b16 %v496
        %v616 = vunpack.c.h.b16 %v496
        %v617 = vunpack.c.l.b16 %v497
        %v618 = vunpack.c.l.b16 %v498
        %v619 = vunpack.c.h.b16 %v498
        %v620 = vunpack.c.l.b16 %v499
        %v621 = vunpack.c.l.b16 %v500
        %v622 = vunpack.c.h.b16 %v500
        %v623 = vunpack.c.l.b16 %v501
        %v624 = vunpack.c.l.b16 %v502
        %v625 = vunpack.c.h.b16 %v502
        %v626 = vunpack.c.l.b16 %v503
        %v627 = vunpack.c.l.b16 %v504
        %v628 = vunpack.c.h.b16 %v504
        %v629 = vunpack.c.l.b16 %v505
        %v630 = vunpack.c.l.b16 %v506
        %v631 = vunpack.c.h.b16 %v506
        %v632 = vunpack.c.l.b16 %v507
        %v633 = vunpack.c.l.b16 %v508
        %v634 = vunpack.c.h.b16 %v508
        %v635 = vunpack.c.l.b16 %v509
        %v636 = vunpack.c.l.b16 %v510
        %v637 = vunpack.c.h.b16 %v510
        %v638 = vunpack.c.l.b16 %v511
        %v639 = vunpack.c.l.b16 %v512
        %v640 = vunpack.c.h.b16 %v512
        %v641 = vunpack.c.l.b16 %v513
        %v642 = vunpack.c.l.b16 %v514
        %v643 = vunpack.c.h.b16 %v514
        %v644 = vunpack.c.l.b16 %v515
        %v645 = vunpack.c.l.b16 %v516
        %v646 = vunpack.c.h.b16 %v516
        %v647 = vunpack.c.l.b16 %v517
        %v648 = vunpack.c.l.b16 %v518
        %v649 = vunpack.c.h.b16 %v518
        %v650 = vunpack.c.l.b16 %v519
        %v651 = vunpack.c.l.b16 %v520
        %v652 = vunpack.c.h.b16 %v520
        %v653 = vunpack.c.l.b16 %v521
        %v654 = vunpack.c.l.b16 %v522
        %v655 = vunpack.c.h.b16 %v522
        %v656 = vunpack.c.l.b16 %v523
        %v657 = vpack.c.b16 %v612, %v609
        %v658 = vpack.c.b16 %v613, %v610
        %v659 = vpack.c.b16 %v614, %v611
        %v660 = vpack.c.b16 %v618, %v615
        %v661 = vpack.c.b16 %v619, %v616
        %v662 = vpack.c.b16 %v620, %v617
        %v663 = vpack.c.b16 %v624, %v621
        %v664 = vpack.c.b16 %v625, %v622
        %v665 = vpack.c.b16 %v626, %v623
        %v666 = vpack.c.b16 %v630, %v627
        %v667 = vpack.c.b16 %v631, %v628
        %v668 = vpack.c.b16 %v632, %v629
        %v669 = vpack.c.b16 %v636, %v633
        %v670 = vpack.c.b16 %v637, %v634
        %v671 = vpack.c.b16 %v638, %v635
        %v672 = vpack.c.b16 %v642, %v639
        %v673 = vpack.c.b16 %v643, %v640
        %v674 = vpack.c.b16 %v644, %v641
        %v675 = vpack.c.b16 %v648, %v645
        %v676 = vpack.c.b16 %v649, %v646
        %v677 = vpack.c.b16 %v650, %v647
        %v678 = vpack.c.b16 %v654, %v651
        %v679 = vpack.c.b16 %v655, %v652
        %v680 = vpack.c.b16 %v656, %v653
        %v753 = vunpack.c.l.b16 %v524
        %v754 = vunpack.c.l.b16 %v525
        %v755 = vunpack.c.l.b16 %v526
        %v756 = vunpack.c.l.b16 %v527
        %v757 = vunpack.c.l.b16 %v528
        %v758 = vunpack.c.l.b16 %v529
        %v759 = vunpack.c.l.b16 %v530
        %v760 = vunpack.c.l.b16 %v531
        %v761 = vunpack.c.l.b16 %v532
        %v762 = vunpack.c.l.b16 %v533
        %v763 = vunpack.c.l.b16 %v534
        %v764 = vunpack.c.l.b16 %v535
        %v765 = vunpack.c.l.b16 %v536
        %v766 = vunpack.c.l.b16 %v537
        %v767 = vunpack.c.l.b16 %v538
        %v768 = vunpack.c.l.b16 %v539
        %v769 = vunpack.c.l.b16 %v540
        %v770 = vunpack.c.l.b16 %v541
        %v771 = vunpack.c.l.b16 %v542
        %v772 = vunpack.c.l.b16 %v543
        %v773 = vunpack.c.l.b16 %v544
        %v774 = vunpack.c.l.b16 %v545
        %v775 = vunpack.c.l.b16 %v546
        %v776 = vunpack.c.l.b16 %v547
        %v777 = vunpack.c.l.b16 %v548
        %v778 = vunpack.c.l.b16 %v549
        %v779 = vunpack.c.l.b16 %v550
        %v780 = vunpack.c.l.b16 %v551
        %v781 = vunpack.c.l.b16 %v552
        %v782 = vunpack.c.l.b16 %v553
        %v783 = vunpack.c.l.b16 %v554
        %v784 = vunpack.c.l.b16 %v555
        %v785 = vunpack.c.l.b16 %v556
        %v786 = vunpack.c.l.b16 %v557
        %v787 = vunpack.c.l.b16 %v558
        %v788 = vunpack.c.l.b16 %v559
        %v789 = vunpack.c.l.b16 %v560
        %v790 = vunpack.c.l.b16 %v561
        %v791 = vunpack.c.l.b16 %v562
        %v792 = vunpack.c.l.b16 %v563
        %v793 = vunpack.c.l.b16 %v564
        %v794 = vunpack.c.l.b16 %v565
        %v795 = vunpack.c.l.b16 %v566
        %v796 = vunpack.c.l.b16 %v567
        %v797 = vunpack.c.l.b16 %v568
        %v798 = vunpack.c.l.b16 %v569
        %v799 = vunpack.c.l.b16 %v570
        %v800 = vunpack.c.l.b16 %v571
        %v801 = vpack.c.b16 %v754, %v753
        %v802 = vpack.c.b16 %v756, %v755
        %v803 = vpack.c.b16 %v758, %v757
        %v804 = vpack.c.b16 %v760, %v759
        %v805 = vpack.c.b16 %v762, %v761
        %v806 = vpack.c.b16 %v764, %v763
        %v807 = vpack.c.b16 %v766, %v765
        %v808 = vpack.c.b16 %v768, %v767
        %v809 = vpack.c.b16 %v770, %v769
        %v810 = vpack.c.b16 %v772, %v771
        %v811 = vpack.c.b16 %v774, %v773
        %v812 = vpack.c.b16 %v776, %v775
        %v813 = vpack.c.b16 %v778, %v777
        %v814 = vpack.c.b16 %v780, %v779
        %v815 = vpack.c.b16 %v782, %v781
        %v816 = vpack.c.b16 %v784, %v783
        %v817 = vpack.c.b16 %v786, %v785
        %v818 = vpack.c.b16 %v788, %v787
        %v819 = vpack.c.b16 %v790, %v789
        %v820 = vpack.c.b16 %v792, %v791
        %v821 = vpack.c.b16 %v794, %v793
        %v822 = vpack.c.b16 %v796, %v795
        %v823 = vpack.c.b16 %v798, %v797
        %v824 = vpack.c.b16 %v800, %v799
        %849 = vmatprep.subr.bf16.mxu0 0
        %850 = vmatpush1.bf16.msra.mxu0 %v801
        %851 = vmatprep.subr.bf16.mxu0 0
        %852 = vmatpush1.bf16.msra.mxu0 %v802
        %853 = vmatprep.subr.bf16.mxu0 0
        %854 = vmatpush1.bf16.msra.mxu0 %v803
        %855 = vmatprep.subr.bf16.mxu0 0
        %856 = vmatpush1.bf16.msra.mxu0 %v804
        %857 = vmatprep.subr.bf16.mxu0 0
        %858 = vmatpush1.bf16.msra.mxu0 %v805
        %859 = vmatprep.subr.bf16.mxu0 0
        %860 = vmatpush1.bf16.msra.mxu0 %v806
        %861 = vmatprep.subr.bf16.mxu0 0
        %862 = vmatpush1.bf16.msra.mxu0 %v807
        %863 = vmatprep.subr.bf16.mxu0 0
        %864 = vmatpush1.bf16.msra.mxu0 %v808
        %865 = vmatprep.subr.bf16.mxu0 0
        %866 = vmatpush1.bf16.msra.mxu0 %v809
        %867 = vmatprep.subr.bf16.mxu0 0
        %868 = vmatpush1.bf16.msra.mxu0 %v810
        %869 = vmatprep.subr.bf16.mxu0 0
        %870 = vmatpush1.bf16.msra.mxu0 %v811
        %871 = vmatprep.subr.bf16.mxu0 0
        %872 = vmatpush1.bf16.msra.mxu0 %v812
        %873 = vmatprep.subr.bf16.mxu0 0
        %874 = vmatpush1.bf16.msra.mxu0 %v813
        %875 = vmatprep.subr.bf16.mxu0 0
        %876 = vmatpush1.bf16.msra.mxu0 %v814
        %877 = vmatprep.subr.bf16.mxu0 0
        %878 = vmatpush1.bf16.msra.mxu0 %v815
        %879 = vmatprep.subr.bf16.mxu0 0
        %880 = vmatpush1.bf16.msra.mxu0 %v816
        %881 = vmatprep.mubr.bf16.mxu0 %v658
        %882 = vmatmul.mubr.bf16.gmra.mrb[0].mxu0 %v657
        %v883 = vpop.f32.mrb[0].mxu0
        %v884 = vadd.f32 %v576, %v883
        %v885 = vpop.f32.mrb[0].mxu0
        %v886 = vpop.f32.mrb[0].mxu0
        %v887 = vadd.f32 %v576, %v886
        %v888 = vpop.f32.mrb[0].mxu0
        %889 = vmatprep.mubr.bf16.mxu0 %v661
        %890 = vmatmul.mubr.bf16.gmra.mrb[0].mxu0 %v660
        %v891 = vpop.f32.mrb[0].mxu0
        %v892 = vadd.f32 %v576, %v891
        %v893 = vpop.f32.mrb[0].mxu0
        %v894 = vpop.f32.mrb[0].mxu0
        %v895 = vadd.f32 %v576, %v894
        %v896 = vpop.f32.mrb[0].mxu0
        %897 = vmatprep.mubr.bf16.mxu0 %v664
        %898 = vmatmul.mubr.bf16.gmra.mrb[0].mxu0 %v663
        %v899 = vpop.f32.mrb[0].mxu0
        %v900 = vadd.f32 %v576, %v899
        %v901 = vpop.f32.mrb[0].mxu0
        %v902 = vpop.f32.mrb[0].mxu0
        %v903 = vadd.f32 %v576, %v902
        %v904 = vpop.f32.mrb[0].mxu0
        %905 = vmatprep.mubr.bf16.mxu0 %v667
        %906 = vmatmul.mubr.bf16.gmra.mrb[0].mxu0 %v666
        %v907 = vpop.f32.mrb[0].mxu0
        %v908 = vadd.f32 %v576, %v907
        %v909 = vpop.f32.mrb[0].mxu0
        %v910 = vpop.f32.mrb[0].mxu0
        %v911 = vadd.f32 %v576, %v910
        %v912 = vpop.f32.mrb[0].mxu0
        %913 = vmatprep.mubr.bf16.mxu0 %v670
        %914 = vmatmul.mubr.bf16.gmra.mrb[0].mxu0 %v669
        %v915 = vpop.f32.mrb[0].mxu0
        %v916 = vadd.f32 %v576, %v915
        %v917 = vpop.f32.mrb[0].mxu0
        %v918 = vpop.f32.mrb[0].mxu0
        %v919 = vadd.f32 %v576, %v918
        %v920 = vpop.f32.mrb[0].mxu0
        %921 = vmatprep.mubr.bf16.mxu0 %v673
        %922 = vmatmul.mubr.bf16.gmra.mrb[0].mxu0 %v672
        %v923 = vpop.f32.mrb[0].mxu0
        %v924 = vadd.f32 %v576, %v923
        %v925 = vpop.f32.mrb[0].mxu0
        %v926 = vpop.f32.mrb[0].mxu0
        %v927 = vadd.f32 %v576, %v926
        %v928 = vpop.f32.mrb[0].mxu0
        %929 = vmatprep.mubr.bf16.mxu0 %v676
        %930 = vmatmul.mubr.bf16.gmra.mrb[0].mxu0 %v675
        %v931 = vpop.f32.mrb[0].mxu0
        %v932 = vadd.f32 %v576, %v931
        %v933 = vpop.f32.mrb[0].mxu0
        %v934 = vpop.f32.mrb[0].mxu0
        %v935 = vadd.f32 %v576, %v934
        %v936 = vpop.f32.mrb[0].mxu0
        %937 = vmatprep.mubr.bf16.mxu0 %v679
        %938 = vmatmul.mubr.bf16.gmra.mrb[0].mxu0 %v678
        %v939 = vpop.f32.mrb[0].mxu0
        %v940 = vadd.f32 %v576, %v939
        %v941 = vpop.f32.mrb[0].mxu0
        %v942 = vpop.f32.mrb[0].mxu0
        %v943 = vadd.f32 %v576, %v942
        %v944 = vpop.f32.mrb[0].mxu0
        %945 = vdwg.mxu0
        %946 = vmatprep.subr.bf16.mxu0 0
        %947 = vmatpush1.bf16.msra.mxu0 %v817
        %948 = vmatprep.subr.bf16.mxu0 0
        %949 = vmatpush1.bf16.msra.mxu0 %v818
        %950 = vmatprep.subr.bf16.mxu0 0
        %951 = vmatpush1.bf16.msra.mxu0 %v819
        %952 = vmatprep.subr.bf16.mxu0 0
        %953 = vmatpush1.bf16.msra.mxu0 %v820
        %954 = vmatprep.subr.bf16.mxu0 0
        %955 = vmatpush1.bf16.msra.mxu0 %v821
        %956 = vmatprep.subr.bf16.mxu0 0
        %957 = vmatpush1.bf16.msra.mxu0 %v822
        %958 = vmatprep.subr.bf16.mxu0 0
        %959 = vmatpush1.bf16.msra.mxu0 %v823
        %960 = vmatprep.subr.bf16.mxu0 0
        %961 = vmatpush1.bf16.msra.mxu0 %v824
        %962 = vmatprep.subr.bf16.mxu0 0
        %963 = vmatpush1.bf16.msra.mxu0 0
        %964 = vmatprep.subr.bf16.mxu0 0
        %965 = vmatpush1.bf16.msra.mxu0 0
        %966 = vmatprep.subr.bf16.mxu0 0
        %967 = vmatpush1.bf16.msra.mxu0 0
        %968 = vmatprep.subr.bf16.mxu0 0
        %969 = vmatpush1.bf16.msra.mxu0 0
        %970 = vmatprep.subr.bf16.mxu0 0
        %971 = vmatpush1.bf16.msra.mxu0 0
        %972 = vmatprep.subr.bf16.mxu0 0
        %973 = vmatpush1.bf16.msra.mxu0 0
        %974 = vmatprep.subr.bf16.mxu0 0
        %975 = vmatpush1.bf16.msra.mxu0 0
        %976 = vmatprep.subr.bf16.mxu0 0
        %977 = vmatpush1.bf16.msra.mxu0 0
        %978 = vmatprep.mubr.bf16.mxu0 0
        %979 = vmatmul.mubr.bf16.gmra.mrb[0].mxu0 %v659
        %v980 = vpop.f32.mrb[0].mxu0
        %v981 = vadd.f32 %v884, %v980
        %v982 = vpop.f32.mrb[0].mxu0
        %v983 = vpop.f32.mrb[0].mxu0
        %v984 = vadd.f32 %v887, %v983
        %v985 = vpop.f32.mrb[0].mxu0
        %986 = vmatprep.mubr.bf16.mxu0 0
        %987 = vmatmul.mubr.bf16.gmra.mrb[0].mxu0 %v662
        %v988 = vpop.f32.mrb[0].mxu0
        %v989 = vadd.f32 %v892, %v988
        %v990 = vpop.f32.mrb[0].mxu0
        %v991 = vpop.f32.mrb[0].mxu0
        %v992 = vadd.f32 %v895, %v991
        %v993 = vpop.f32.mrb[0].mxu0
        %994 = vmatprep.mubr.bf16.mxu0 0
        %995 = vmatmul.mubr.bf16.gmra.mrb[0].mxu0 %v665
        %v996 = vpop.f32.mrb[0].mxu0
        %v997 = vadd.f32 %v900, %v996
        %v998 = vpop.f32.mrb[0].mxu0
        %v999 = vpop.f32.mrb[0].mxu0
        %v1000 = vadd.f32 %v903, %v999
        %v1001 = vpop.f32.mrb[0].mxu0
        %1002 = vmatprep.mubr.bf16.mxu0 0
        %1003 = vmatmul.mubr.bf16.gmra.mrb[0].mxu0 %v668
        %v1004 = vpop.f32.mrb[0].mxu0
        %v1005 = vadd.f32 %v908, %v1004
        %v1006 = vpop.f32.mrb[0].mxu0
        %v1007 = vpop.f32.mrb[0].mxu0
        %v1008 = vadd.f32 %v911, %v1007
        %v1009 = vpop.f32.mrb[0].mxu0
        %1010 = vmatprep.mubr.bf16.mxu0 0
        %1011 = vmatmul.mubr.bf16.gmra.mrb[0].mxu0 %v671
        %v1012 = vpop.f32.mrb[0].mxu0
        %v1013 = vadd.f32 %v916, %v1012
        %v1014 = vpop.f32.mrb[0].mxu0
        %v1015 = vpop.f32.mrb[0].mxu0
        %v1016 = vadd.f32 %v919, %v1015
        %v1017 = vpop.f32.mrb[0].mxu0
        %1018 = vmatprep.mubr.bf16.mxu0 0
        %1019 = vmatmul.mubr.bf16.gmra.mrb[0].mxu0 %v674
        %v1020 = vpop.f32.mrb[0].mxu0
        %v1021 = vadd.f32 %v924, %v1020
        %v1022 = vpop.f32.mrb[0].mxu0
        %v1023 = vpop.f32.mrb[0].mxu0
        %v1024 = vadd.f32 %v927, %v1023
        %v1025 = vpop.f32.mrb[0].mxu0
        %1026 = vmatprep.mubr.bf16.mxu0 0
        %1027 = vmatmul.mubr.bf16.gmra.mrb[0].mxu0 %v677
        %v1028 = vpop.f32.mrb[0].mxu0
        %v1029 = vadd.f32 %v932, %v1028
        %v1030 = vpop.f32.mrb[0].mxu0
        %v1031 = vpop.f32.mrb[0].mxu0
        %v1032 = vadd.f32 %v935, %v1031
        %v1033 = vpop.f32.mrb[0].mxu0
        %1034 = vmatprep.mubr.bf16.mxu0 0
        %1035 = vmatmul.mubr.bf16.gmra.mrb[0].mxu0 %v680
        %v1036 = vpop.f32.mrb[0].mxu0
        %v1037 = vadd.f32 %v940, %v1036
        %v1038 = vpop.f32.mrb[0].mxu0
        %v1039 = vpop.f32.mrb[0].mxu0
        %v1040 = vadd.f32 %v943, %v1039
        %v1041 = vpop.f32.mrb[0].mxu0
        %1042 = vdwg.mxu0
        %v1043 = vmax.f32 %v981, 0.0
        %v1044 = vmax.f32 %v984, 0.0
        %v1045 = vmax.f32 %v989, 0.0
        %v1046 = vmax.f32 %v992, 0.0
        %v1047 = vmax.f32 %v997, 0.0
        %v1048 = vmax.f32 %v1000, 0.0
        %v1049 = vmax.f32 %v1005, 0.0
        %v1050 = vmax.f32 %v1008, 0.0
        %v1051 = vmax.f32 %v1013, 0.0
        %v1052 = vmax.f32 %v1016, 0.0
        %v1053 = vmax.f32 %v1021, 0.0
        %v1054 = vmax.f32 %v1024, 0.0
        %v1055 = vmax.f32 %v1029, 0.0
        %v1056 = vmax.f32 %v1032, 0.0
        %v1057 = vmax.f32 %v1037, 0.0
        %v1058 = vmax.f32 %v1040, 0.0
        %v1059 = vpack.c.bf16 %v1044, %v1043
        %v1060 = vpack.c.bf16 %v1046, %v1045
        %v1061 = vpack.c.bf16 %v1048, %v1047
        %v1062 = vpack.c.bf16 %v1050, %v1049
        %v1063 = vpack.c.bf16 %v1052, %v1051
        %v1064 = vpack.c.bf16 %v1054, %v1053
        %v1065 = vpack.c.bf16 %v1056, %v1055
        %v1066 = vpack.c.bf16 %v1058, %v1057
        %v1067 = vld [vmem:[#allocation5] sm:$0xf]
        %v1068 = vld [vmem:[#allocation5 + $0x4] sm:$0xf]
        %v1069 = vld [vmem:[#allocation5 + $0x8] sm:$0xf]
        %v1070 = vld [vmem:[#allocation5 + $0xc] sm:$0xf]
        %v1071 = vld [vmem:[#allocation5 + $0x10] sm:$0xf]
        %v1072 = vld [vmem:[#allocation5 + $0x14] sm:$0xf]
        %v1073 = vld [vmem:[#allocation5 + $0x18] sm:$0xf]
        %v1074 = vld [vmem:[#allocation5 + $0x1c] sm:$0xf]
        %v1075 = vld [vmem:[#allocation5 + $0x20] sm:$0xf]
        %v1076 = vld [vmem:[#allocation5 + $0x24] sm:$0xf]
        %v1077 = vld [vmem:[#allocation5 + $0x28] sm:$0xf]
        %v1078 = vld [vmem:[#allocation5 + $0x2c] sm:$0xf]
        %v1079 = vld [vmem:[#allocation5 + $0x30] sm:$0xf]
        %v1080 = vld [vmem:[#allocation5 + $0x34] sm:$0xf]
        %v1081 = vld [vmem:[#allocation5 + $0x38] sm:$0xf]
        %v1082 = vld [vmem:[#allocation5 + $0x3c] sm:$0xf]
        %v1083 = vld [vmem:[%s9 + $0x1] sm:$0x1]
        %v1084 = vlaneseq
        %v1085 = vshrl.u32 %v1084, 7
        %v1086 = vsub.s32 0, %v1085
        %v1087 = vrot.slane %v1083, %v1086
        %v1104 = vunpack.c.l.b16 %v1067
        %v1105 = vunpack.c.l.b16 %v1068
        %v1106 = vunpack.c.l.b16 %v1069
        %v1107 = vunpack.c.l.b16 %v1070
        %v1108 = vunpack.c.l.b16 %v1071
        %v1109 = vunpack.c.l.b16 %v1072
        %v1110 = vunpack.c.l.b16 %v1073
        %v1111 = vunpack.c.l.b16 %v1074
        %v1112 = vunpack.c.l.b16 %v1075
        %v1113 = vunpack.c.l.b16 %v1076
        %v1114 = vunpack.c.l.b16 %v1077
        %v1115 = vunpack.c.l.b16 %v1078
        %v1116 = vunpack.c.l.b16 %v1079
        %v1117 = vunpack.c.l.b16 %v1080
        %v1118 = vunpack.c.l.b16 %v1081
        %v1119 = vunpack.c.l.b16 %v1082
        %v1120 = vpack.c.b16 %v1105, %v1104
        %v1121 = vpack.c.b16 %v1107, %v1106
        %v1122 = vpack.c.b16 %v1109, %v1108
        %v1123 = vpack.c.b16 %v1111, %v1110
        %v1124 = vpack.c.b16 %v1113, %v1112
        %v1125 = vpack.c.b16 %v1115, %v1114
        %v1126 = vpack.c.b16 %v1117, %v1116
        %v1127 = vpack.c.b16 %v1119, %v1118
        %1136 = vmatprep.subr.bf16.mxu0 0
        %1137 = vmatpush1.bf16.msra.mxu0 %v1120
        %1138 = vmatprep.subr.bf16.mxu0 0
        %1139 = vmatpush1.bf16.msra.mxu0 %v1121
        %1140 = vmatprep.subr.bf16.mxu0 0
        %1141 = vmatpush1.bf16.msra.mxu0 %v1122
        %1142 = vmatprep.subr.bf16.mxu0 0
        %1143 = vmatpush1.bf16.msra.mxu0 %v1123
        %1144 = vmatprep.subr.bf16.mxu0 0
        %1145 = vmatpush1.bf16.msra.mxu0 %v1124
        %1146 = vmatprep.subr.bf16.mxu0 0
        %1147 = vmatpush1.bf16.msra.mxu0 %v1125
        %1148 = vmatprep.subr.bf16.mxu0 0
        %1149 = vmatpush1.bf16.msra.mxu0 %v1126
        %1150 = vmatprep.subr.bf16.mxu0 0
        %1151 = vmatpush1.bf16.msra.mxu0 %v1127
        %1152 = vmatprep.subr.bf16.mxu0 0
        %1153 = vmatpush1.bf16.msra.mxu0 0
        %1154 = vmatprep.subr.bf16.mxu0 0
        %1155 = vmatpush1.bf16.msra.mxu0 0
        %1156 = vmatprep.subr.bf16.mxu0 0
        %1157 = vmatpush1.bf16.msra.mxu0 0
        %1158 = vmatprep.subr.bf16.mxu0 0
        %1159 = vmatpush1.bf16.msra.mxu0 0
        %1160 = vmatprep.subr.bf16.mxu0 0
        %1161 = vmatpush1.bf16.msra.mxu0 0
        %1162 = vmatprep.subr.bf16.mxu0 0
        %1163 = vmatpush1.bf16.msra.mxu0 0
        %1164 = vmatprep.subr.bf16.mxu0 0
        %1165 = vmatpush1.bf16.msra.mxu0 0
        %1166 = vmatprep.subr.bf16.mxu0 0
        %1167 = vmatpush1.bf16.msra.mxu0 0
        %1168 = vmatprep.mubr.bf16.mxu0 0
        %1169 = vmatmul.mubr.bf16.gmra.mrb[0].mxu0 %v1059
        %v1170 = vpop.f32.mrb[0].mxu0
        %v1171 = vadd.f32 %v1087, %v1170
        %v1172 = vpop.f32.mrb[0].mxu0
        %v1173 = vpop.f32.mrb[0].mxu0
        %v1174 = vadd.f32 %v1087, %v1173
        %v1175 = vpop.f32.mrb[0].mxu0
        %1176 = vmatprep.mubr.bf16.mxu0 0
        %1177 = vmatmul.mubr.bf16.gmra.mrb[0].mxu0 %v1060
        %v1178 = vpop.f32.mrb[0].mxu0
        %v1179 = vadd.f32 %v1087, %v1178
        %v1180 = vpop.f32.mrb[0].mxu0
        %v1181 = vpop.f32.mrb[0].mxu0
        %v1182 = vadd.f32 %v1087, %v1181
        %v1183 = vpop.f32.mrb[0].mxu0
        %1184 = vmatprep.mubr.bf16.mxu0 0
        %1185 = vmatmul.mubr.bf16.gmra.mrb[0].mxu0 %v1061
        %v1186 = vpop.f32.mrb[0].mxu0
        %v1187 = vadd.f32 %v1087, %v1186
        %v1188 = vpop.f32.mrb[0].mxu0
        %v1189 = vpop.f32.mrb[0].mxu0
        %v1190 = vadd.f32 %v1087, %v1189
        %v1191 = vpop.f32.mrb[0].mxu0
        %1192 = vmatprep.mubr.bf16.mxu0 0
        %1193 = vmatmul.mubr.bf16.gmra.mrb[0].mxu0 %v1062
        %v1194 = vpop.f32.mrb[0].mxu0
        %v1195 = vadd.f32 %v1087, %v1194
        %v1196 = vpop.f32.mrb[0].mxu0
        %v1197 = vpop.f32.mrb[0].mxu0
        %v1198 = vadd.f32 %v1087, %v1197
        %v1199 = vpop.f32.mrb[0].mxu0
        %1200 = vmatprep.mubr.bf16.mxu0 0
        %1201 = vmatmul.mubr.bf16.gmra.mrb[0].mxu0 %v1063
        %v1202 = vpop.f32.mrb[0].mxu0
        %v1203 = vadd.f32 %v1087, %v1202
        %v1204 = vpop.f32.mrb[0].mxu0
        %v1205 = vpop.f32.mrb[0].mxu0
        %v1206 = vadd.f32 %v1087, %v1205
        %v1207 = vpop.f32.mrb[0].mxu0
        %1208 = vmatprep.mubr.bf16.mxu0 0
        %1209 = vmatmul.mubr.bf16.gmra.mrb[0].mxu0 %v1064
        %v1210 = vpop.f32.mrb[0].mxu0
        %v1211 = vadd.f32 %v1087, %v1210
        %v1212 = vpop.f32.mrb[0].mxu0
        %v1213 = vpop.f32.mrb[0].mxu0
        %v1214 = vadd.f32 %v1087, %v1213
        %v1215 = vpop.f32.mrb[0].mxu0
        %1216 = vmatprep.mubr.bf16.mxu0 0
        %1217 = vmatmul.mubr.bf16.gmra.mrb[0].mxu0 %v1065
        %v1218 = vpop.f32.mrb[0].mxu0
        %v1219 = vadd.f32 %v1087, %v1218
        %v1220 = vpop.f32.mrb[0].mxu0
        %v1221 = vpop.f32.mrb[0].mxu0
        %v1222 = vadd.f32 %v1087, %v1221
        %v1223 = vpop.f32.mrb[0].mxu0
        %1224 = vmatprep.mubr.bf16.mxu0 0
        %1225 = vmatmul.mubr.bf16.gmra.mrb[0].mxu0 %v1066
        %v1226 = vpop.f32.mrb[0].mxu0
        %v1227 = vadd.f32 %v1087, %v1226
        %v1228 = vpop.f32.mrb[0].mxu0
        %v1229 = vpop.f32.mrb[0].mxu0
        %v1230 = vadd.f32 %v1087, %v1229
        %v1231 = vpop.f32.mrb[0].mxu0
        %1232 = vdwg.mxu0
        %v1233 = vmax.f32 %v1171, 0.0
        %v1234 = vmax.f32 %v1174, 0.0
        %v1235 = vmax.f32 %v1179, 0.0
        %v1236 = vmax.f32 %v1182, 0.0
        %v1237 = vmax.f32 %v1187, 0.0
        %v1238 = vmax.f32 %v1190, 0.0
        %v1239 = vmax.f32 %v1195, 0.0
        %v1240 = vmax.f32 %v1198, 0.0
        %v1241 = vmax.f32 %v1203, 0.0
        %v1242 = vmax.f32 %v1206, 0.0
        %v1243 = vmax.f32 %v1211, 0.0
        %v1244 = vmax.f32 %v1214, 0.0
        %v1245 = vmax.f32 %v1219, 0.0
        %v1246 = vmax.f32 %v1222, 0.0
        %v1247 = vmax.f32 %v1227, 0.0
        %v1248 = vmax.f32 %v1230, 0.0
        %v1249 = vpack.c.bf16 %v1234, %v1233
        %v1250 = vpack.c.bf16 %v1236, %v1235
        %v1251 = vpack.c.bf16 %v1238, %v1237
        %v1252 = vpack.c.bf16 %v1240, %v1239
        %v1253 = vpack.c.bf16 %v1242, %v1241
        %v1254 = vpack.c.bf16 %v1244, %v1243
        %v1255 = vpack.c.bf16 %v1246, %v1245
        %v1256 = vpack.c.bf16 %v1248, %v1247
        %v1257 = vld [vmem:[#allocation7] sm:$0xf]
        %v1258 = vld [vmem:[#allocation7 + $0x4] sm:$0xf]
        %v1259 = vld [vmem:[#allocation7 + $0x8] sm:$0xf]
        %v1260 = vld [vmem:[#allocation7 + $0xc] sm:$0xf]
        %v1261 = vld [vmem:[#allocation7 + $0x10] sm:$0xf]
        %v1262 = vld [vmem:[#allocation7 + $0x14] sm:$0xf]
        %v1263 = vld [vmem:[#allocation7 + $0x18] sm:$0xf]
        %v1264 = vld [vmem:[#allocation7 + $0x1c] sm:$0xf]
        %v1265 = vld [vmem:[#allocation7 + $0x20] sm:$0xf]
        %v1266 = vld [vmem:[#allocation7 + $0x24] sm:$0xf]
        %v1267 = vld [vmem:[#allocation7 + $0x28] sm:$0xf]
        %v1268 = vld [vmem:[#allocation7 + $0x2c] sm:$0xf]
        %v1269 = vld [vmem:[#allocation7 + $0x30] sm:$0xf]
        %v1270 = vld [vmem:[#allocation7 + $0x34] sm:$0xf]
        %v1271 = vld [vmem:[#allocation7 + $0x38] sm:$0xf]
        %v1272 = vld [vmem:[#allocation7 + $0x3c] sm:$0xf]
        %v1273 = vld [vmem:[%s9 + $0x2] sm:$0x1]
        %v1274 = vlaneseq
        %v1275 = vshrl.u32 %v1274, 7
        %v1276 = vsub.s32 0, %v1275
        %v1277 = vrot.slane %v1273, %v1276
        %v1294 = vunpack.c.l.b16 %v1257
        %v1295 = vunpack.c.l.b16 %v1258
        %v1296 = vunpack.c.l.b16 %v1259
        %v1297 = vunpack.c.l.b16 %v1260
        %v1298 = vunpack.c.l.b16 %v1261
        %v1299 = vunpack.c.l.b16 %v1262
        %v1300 = vunpack.c.l.b16 %v1263
        %v1301 = vunpack.c.l.b16 %v1264
        %v1302 = vunpack.c.l.b16 %v1265
        %v1303 = vunpack.c.l.b16 %v1266
        %v1304 = vunpack.c.l.b16 %v1267
        %v1305 = vunpack.c.l.b16 %v1268
        %v1306 = vunpack.c.l.b16 %v1269
        %v1307 = vunpack.c.l.b16 %v1270
        %v1308 = vunpack.c.l.b16 %v1271
        %v1309 = vunpack.c.l.b16 %v1272
        %v1310 = vpack.c.b16 %v1295, %v1294
        %v1311 = vpack.c.b16 %v1297, %v1296
        %v1312 = vpack.c.b16 %v1299, %v1298
        %v1313 = vpack.c.b16 %v1301, %v1300
        %v1314 = vpack.c.b16 %v1303, %v1302
        %v1315 = vpack.c.b16 %v1305, %v1304
        %v1316 = vpack.c.b16 %v1307, %v1306
        %v1317 = vpack.c.b16 %v1309, %v1308
        %1326 = vmatprep.subr.bf16.mxu0 0
        %1327 = vmatpush1.bf16.msra.mxu0 %v1310
        %1328 = vmatprep.subr.bf16.mxu0 0
        %1329 = vmatpush1.bf16.msra.mxu0 %v1311
        %1330 = vmatprep.subr.bf16.mxu0 0
        %1331 = vmatpush1.bf16.msra.mxu0 %v1312
        %1332 = vmatprep.subr.bf16.mxu0 0
        %1333 = vmatpush1.bf16.msra.mxu0 %v1313
        %1334 = vmatprep.subr.bf16.mxu0 0
        %1335 = vmatpush1.bf16.msra.mxu0 %v1314
        %1336 = vmatprep.subr.bf16.mxu0 0
        %1337 = vmatpush1.bf16.msra.mxu0 %v1315
        %1338 = vmatprep.subr.bf16.mxu0 0
        %1339 = vmatpush1.bf16.msra.mxu0 %v1316
        %1340 = vmatprep.subr.bf16.mxu0 0
        %1341 = vmatpush1.bf16.msra.mxu0 %v1317
        %1342 = vmatprep.subr.bf16.mxu0 0
        %1343 = vmatpush1.bf16.msra.mxu0 0
        %1344 = vmatprep.subr.bf16.mxu0 0
        %1345 = vmatpush1.bf16.msra.mxu0 0
        %1346 = vmatprep.subr.bf16.mxu0 0
        %1347 = vmatpush1.bf16.msra.mxu0 0
        %1348 = vmatprep.subr.bf16.mxu0 0
        %1349 = vmatpush1.bf16.msra.mxu0 0
        %1350 = vmatprep.subr.bf16.mxu0 0
        %1351 = vmatpush1.bf16.msra.mxu0 0
        %1352 = vmatprep.subr.bf16.mxu0 0
        %1353 = vmatpush1.bf16.msra.mxu0 0
        %1354 = vmatprep.subr.bf16.mxu0 0
        %1355 = vmatpush1.bf16.msra.mxu0 0
        %1356 = vmatprep.subr.bf16.mxu0 0
        %1357 = vmatpush1.bf16.msra.mxu0 0
        %1358 = vmatprep.mubr.bf16.mxu0 0
        %1359 = vmatmul.mubr.bf16.gmra.mrb[0].mxu0 %v1249
        %v1360 = vpop.f32.mrb[0].mxu0
        %v1361 = vadd.f32 %v1277, %v1360
        %v1362 = vpop.f32.mrb[0].mxu0
        %v1363 = vpop.f32.mrb[0].mxu0
        %v1364 = vadd.f32 %v1277, %v1363
        %v1365 = vpop.f32.mrb[0].mxu0
        %1366 = vmatprep.mubr.bf16.mxu0 0
        %1367 = vmatmul.mubr.bf16.gmra.mrb[0].mxu0 %v1250
        %v1368 = vpop.f32.mrb[0].mxu0
        %v1369 = vadd.f32 %v1277, %v1368
        %v1370 = vpop.f32.mrb[0].mxu0
        %v1371 = vpop.f32.mrb[0].mxu0
        %v1372 = vadd.f32 %v1277, %v1371
        %v1373 = vpop.f32.mrb[0].mxu0
        %1374 = vmatprep.mubr.bf16.mxu0 0
        %1375 = vmatmul.mubr.bf16.gmra.mrb[0].mxu0 %v1251
        %v1376 = vpop.f32.mrb[0].mxu0
        %v1377 = vadd.f32 %v1277, %v1376
        %v1378 = vpop.f32.mrb[0].mxu0
        %v1379 = vpop.f32.mrb[0].mxu0
        %v1380 = vadd.f32 %v1277, %v1379
        %v1381 = vpop.f32.mrb[0].mxu0
        %1382 = vmatprep.mubr.bf16.mxu0 0
        %1383 = vmatmul.mubr.bf16.gmra.mrb[0].mxu0 %v1252
        %v1384 = vpop.f32.mrb[0].mxu0
        %v1385 = vadd.f32 %v1277, %v1384
        %v1386 = vpop.f32.mrb[0].mxu0
        %v1387 = vpop.f32.mrb[0].mxu0
        %v1388 = vadd.f32 %v1277, %v1387
        %v1389 = vpop.f32.mrb[0].mxu0
        %1390 = vmatprep.mubr.bf16.mxu0 0
        %1391 = vmatmul.mubr.bf16.gmra.mrb[0].mxu0 %v1253
        %v1392 = vpop.f32.mrb[0].mxu0
        %v1393 = vadd.f32 %v1277, %v1392
        %v1394 = vpop.f32.mrb[0].mxu0
        %v1395 = vpop.f32.mrb[0].mxu0
        %v1396 = vadd.f32 %v1277, %v1395
        %v1397 = vpop.f32.mrb[0].mxu0
        %1398 = vmatprep.mubr.bf16.mxu0 0
        %1399 = vmatmul.mubr.bf16.gmra.mrb[0].mxu0 %v1254
        %v1400 = vpop.f32.mrb[0].mxu0
        %v1401 = vadd.f32 %v1277, %v1400
        %v1402 = vpop.f32.mrb[0].mxu0
        %v1403 = vpop.f32.mrb[0].mxu0
        %v1404 = vadd.f32 %v1277, %v1403
        %v1405 = vpop.f32.mrb[0].mxu0
        %1406 = vmatprep.mubr.bf16.mxu0 0
        %1407 = vmatmul.mubr.bf16.gmra.mrb[0].mxu0 %v1255
        %v1408 = vpop.f32.mrb[0].mxu0
        %v1409 = vadd.f32 %v1277, %v1408
        %v1410 = vpop.f32.mrb[0].mxu0
        %v1411 = vpop.f32.mrb[0].mxu0
        %v1412 = vadd.f32 %v1277, %v1411
        %v1413 = vpop.f32.mrb[0].mxu0
        %1414 = vmatprep.mubr.bf16.mxu0 0
        %1415 = vmatmul.mubr.bf16.gmra.mrb[0].mxu0 %v1256
        %v1416 = vpop.f32.mrb[0].mxu0
        %v1417 = vadd.f32 %v1277, %v1416
        %v1418 = vpop.f32.mrb[0].mxu0
        %v1419 = vpop.f32.mrb[0].mxu0
        %v1420 = vadd.f32 %v1277, %v1419
        %v1421 = vpop.f32.mrb[0].mxu0
        %1422 = vdwg.mxu0
        %v1423 = vmax.f32 %v1361, 0.0
        %v1424 = vmax.f32 %v1364, 0.0
        %v1425 = vmax.f32 %v1369, 0.0
        %v1426 = vmax.f32 %v1372, 0.0
        %v1427 = vmax.f32 %v1377, 0.0
        %v1428 = vmax.f32 %v1380, 0.0
        %v1429 = vmax.f32 %v1385, 0.0
        %v1430 = vmax.f32 %v1388, 0.0
        %v1431 = vmax.f32 %v1393, 0.0
        %v1432 = vmax.f32 %v1396, 0.0
        %v1433 = vmax.f32 %v1401, 0.0
        %v1434 = vmax.f32 %v1404, 0.0
        %v1435 = vmax.f32 %v1409, 0.0
        %v1436 = vmax.f32 %v1412, 0.0
        %v1437 = vmax.f32 %v1417, 0.0
        %v1438 = vmax.f32 %v1420, 0.0
        %v1439 = vlaneseq
        %v1440 = vand.u32 %v1439, 127
        %v1441 = vld [vmem:[%s483] sm:$0xff]
        %v1442 = vld [vmem:[%s483 + $0x8] sm:$0xff]
        %v1443 = vld [vmem:[%s483 + $0x10] sm:$0xff]
        %v1444 = vld [vmem:[%s483 + $0x18] sm:$0xff]
        %v1445 = vld [vmem:[%s483 + $0x20] sm:$0xff]
        %v1446 = vld [vmem:[%s483 + $0x28] sm:$0xff]
        %v1447 = vld [vmem:[%s483 + $0x30] sm:$0xff]
        %v1448 = vld [vmem:[%s483 + $0x38] sm:$0xff]
        %v1449 = vld [vmem:[%s483 + $0x40] sm:$0xff]
        %v1450 = vld [vmem:[%s483 + $0x48] sm:$0xff]
        %v1451 = vld [vmem:[%s483 + $0x50] sm:$0xff]
        %v1452 = vld [vmem:[%s483 + $0x58] sm:$0xff]
        %v1453 = vld [vmem:[%s483 + $0x60] sm:$0xff]
        %v1454 = vld [vmem:[%s483 + $0x68] sm:$0xff]
        %v1455 = vld [vmem:[%s483 + $0x70] sm:$0xff]
        %v1456 = vld [vmem:[%s483 + $0x78] sm:$0xff]
        %1457 = vset.pattern.permute.xlu0 0
        %1458 = vperm.xlu0 %1457, %v1441
        %v1459 = vpop.permute.xlu0 %1458
        %1460 = vset.pattern.permute.xlu0 0
        %1461 = vperm.xlu0 %1460, %v1442
        %v1462 = vpop.permute.xlu0 %1461
        %1463 = vset.pattern.permute.xlu0 0
        %1464 = vperm.xlu0 %1463, %v1443
        %v1465 = vpop.permute.xlu0 %1464
        %1466 = vset.pattern.permute.xlu0 0
        %1467 = vperm.xlu0 %1466, %v1444
        %v1468 = vpop.permute.xlu0 %1467
        %1469 = vset.pattern.permute.xlu0 0
        %1470 = vperm.xlu0 %1469, %v1445
        %v1471 = vpop.permute.xlu0 %1470
        %1472 = vset.pattern.permute.xlu0 0
        %1473 = vperm.xlu0 %1472, %v1446
        %v1474 = vpop.permute.xlu0 %1473
        %1475 = vset.pattern.permute.xlu0 0
        %1476 = vperm.xlu0 %1475, %v1447
        %v1477 = vpop.permute.xlu0 %1476
        %1478 = vset.pattern.permute.xlu0 0
        %1479 = vperm.xlu0 %1478, %v1448
        %v1480 = vpop.permute.xlu0 %1479
        %1481 = vset.pattern.permute.xlu0 0
        %1482 = vperm.xlu0 %1481, %v1449
        %v1483 = vpop.permute.xlu0 %1482
        %1484 = vset.pattern.permute.xlu0 0
        %1485 = vperm.xlu0 %1484, %v1450
        %v1486 = vpop.permute.xlu0 %1485
        %1487 = vset.pattern.permute.xlu0 0
        %1488 = vperm.xlu0 %1487, %v1451
        %v1489 = vpop.permute.xlu0 %1488
        %1490 = vset.pattern.permute.xlu0 0
        %1491 = vperm.xlu0 %1490, %v1452
        %v1492 = vpop.permute.xlu0 %1491
        %1493 = vset.pattern.permute.xlu0 0
        %1494 = vperm.xlu0 %1493, %v1453
        %v1495 = vpop.permute.xlu0 %1494
        %1496 = vset.pattern.permute.xlu0 0
        %1497 = vperm.xlu0 %1496, %v1454
        %v1498 = vpop.permute.xlu0 %1497
        %1499 = vset.pattern.permute.xlu0 0
        %1500 = vperm.xlu0 %1499, %v1455
        %v1501 = vpop.permute.xlu0 %1500
        %1502 = vset.pattern.permute.xlu0 0
        %1503 = vperm.xlu0 %1502, %v1456
        %v1504 = vpop.permute.xlu0 %1503
        %vm1505 = vcmp.eq.s32.totalorder %v1440, %v1459
        %vm1506 = vcmp.eq.s32.totalorder %v1440, %v1462
        %vm1507 = vcmp.eq.s32.totalorder %v1440, %v1465
        %vm1508 = vcmp.eq.s32.totalorder %v1440, %v1468
        %vm1509 = vcmp.eq.s32.totalorder %v1440, %v1471
        %vm1510 = vcmp.eq.s32.totalorder %v1440, %v1474
        %vm1511 = vcmp.eq.s32.totalorder %v1440, %v1477
        %vm1512 = vcmp.eq.s32.totalorder %v1440, %v1480
        %vm1513 = vcmp.eq.s32.totalorder %v1440, %v1483
        %vm1514 = vcmp.eq.s32.totalorder %v1440, %v1486
        %vm1515 = vcmp.eq.s32.totalorder %v1440, %v1489
        %vm1516 = vcmp.eq.s32.totalorder %v1440, %v1492
        %vm1517 = vcmp.eq.s32.totalorder %v1440, %v1495
        %vm1518 = vcmp.eq.s32.totalorder %v1440, %v1498
        %vm1519 = vcmp.eq.s32.totalorder %v1440, %v1501
        %vm1520 = vcmp.eq.s32.totalorder %v1440, %v1504
        %v1521 = vsel %vm1505, 1, 0
        %v1522 = vsel %vm1506, 1, 0
        %v1523 = vsel %vm1507, 1, 0
        %v1524 = vsel %vm1508, 1, 0
        %v1525 = vsel %vm1509, 1, 0
        %v1526 = vsel %vm1510, 1, 0
        %v1527 = vsel %vm1511, 1, 0
        %v1528 = vsel %vm1512, 1, 0
        %v1529 = vsel %vm1513, 1, 0
        %v1530 = vsel %vm1514, 1, 0
        %v1531 = vsel %vm1515, 1, 0
        %v1532 = vsel %vm1516, 1, 0
        %v1533 = vsel %vm1517, 1, 0
        %v1534 = vsel %vm1518, 1, 0
        %v1535 = vsel %vm1519, 1, 0
        %v1536 = vsel %vm1520, 1, 0
        %v1537 = vcvt.s32.f32 %v1521
        %v1538 = vcvt.s32.f32 %v1522
        %v1539 = vcvt.s32.f32 %v1523
        %v1540 = vcvt.s32.f32 %v1524
        %v1541 = vcvt.s32.f32 %v1525
        %v1542 = vcvt.s32.f32 %v1526
        %v1543 = vcvt.s32.f32 %v1527
        %v1544 = vcvt.s32.f32 %v1528
        %v1545 = vcvt.s32.f32 %v1529
        %v1546 = vcvt.s32.f32 %v1530
        %v1547 = vcvt.s32.f32 %v1531
        %v1548 = vcvt.s32.f32 %v1532
        %v1549 = vcvt.s32.f32 %v1533
        %v1550 = vcvt.s32.f32 %v1534
        %v1551 = vcvt.s32.f32 %v1535
        %v1552 = vcvt.s32.f32 %v1536
        %v1553 = vpack.c.bf16 %v1538, %v1537
        %v1554 = vpack.c.bf16 %v1540, %v1539
        %v1555 = vpack.c.bf16 %v1542, %v1541
        %v1556 = vpack.c.bf16 %v1544, %v1543
        %v1557 = vpack.c.bf16 %v1546, %v1545
        %v1558 = vpack.c.bf16 %v1548, %v1547
        %v1559 = vpack.c.bf16 %v1550, %v1549
        %v1560 = vpack.c.bf16 %v1552, %v1551
        %v1561 = vld [vmem:[%s2] sm:$0xf]
        %v1562 = vld [vmem:[%s2 + $0x4] sm:$0xf]
        %v1563 = vld [vmem:[%s2 + $0x8] sm:$0xf]
        %v1564 = vld [vmem:[%s2 + $0xc] sm:$0xf]
        %v1565 = vld [vmem:[%s2 + $0x10] sm:$0xf]
        %v1566 = vld [vmem:[%s2 + $0x14] sm:$0xf]
        %v1567 = vld [vmem:[%s2 + $0x18] sm:$0xf]
        %v1568 = vld [vmem:[%s2 + $0x1c] sm:$0xf]
        %v1569 = vld [vmem:[%s2 + $0x20] sm:$0xf]
        %v1570 = vld [vmem:[%s2 + $0x24] sm:$0xf]
        %v1571 = vld [vmem:[%s2 + $0x28] sm:$0xf]
        %v1572 = vld [vmem:[%s2 + $0x2c] sm:$0xf]
        %v1573 = vld [vmem:[%s2 + $0x30] sm:$0xf]
        %v1574 = vld [vmem:[%s2 + $0x34] sm:$0xf]
        %v1575 = vld [vmem:[%s2 + $0x38] sm:$0xf]
        %v1576 = vld [vmem:[%s2 + $0x3c] sm:$0xf]
        %v1593 = vunpack.c.l.b16 %v1561
        %v1594 = vunpack.c.l.b16 %v1562
        %v1595 = vunpack.c.l.b16 %v1563
        %v1596 = vunpack.c.l.b16 %v1564
        %v1597 = vunpack.c.l.b16 %v1565
        %v1598 = vunpack.c.l.b16 %v1566
        %v1599 = vunpack.c.l.b16 %v1567
        %v1600 = vunpack.c.l.b16 %v1568
        %v1601 = vunpack.c.l.b16 %v1569
        %v1602 = vunpack.c.l.b16 %v1570
        %v1603 = vunpack.c.l.b16 %v1571
        %v1604 = vunpack.c.l.b16 %v1572
        %v1605 = vunpack.c.l.b16 %v1573
        %v1606 = vunpack.c.l.b16 %v1574
        %v1607 = vunpack.c.l.b16 %v1575
        %v1608 = vunpack.c.l.b16 %v1576
        %v1609 = vpack.c.b16 %v1594, %v1593
        %v1610 = vpack.c.b16 %v1596, %v1595
        %v1611 = vpack.c.b16 %v1598, %v1597
        %v1612 = vpack.c.b16 %v1600, %v1599
        %v1613 = vpack.c.b16 %v1602, %v1601
        %v1614 = vpack.c.b16 %v1604, %v1603
        %v1615 = vpack.c.b16 %v1606, %v1605
        %v1616 = vpack.c.b16 %v1608, %v1607
        %1625 = vmatprep.subr.bf16.mxu0 0
        %1626 = vmatpush1.bf16.msra.mxu0 %v1609
        %1627 = vmatprep.subr.bf16.mxu0 0
        %1628 = vmatpush1.bf16.msra.mxu0 %v1610
        %1629 = vmatprep.subr.bf16.mxu0 0
        %1630 = vmatpush1.bf16.msra.mxu0 %v1611
        %1631 = vmatprep.subr.bf16.mxu0 0
        %1632 = vmatpush1.bf16.msra.mxu0 %v1612
        %1633 = vmatprep.subr.bf16.mxu0 0
        %1634 = vmatpush1.bf16.msra.mxu0 %v1613
        %1635 = vmatprep.subr.bf16.mxu0 0
        %1636 = vmatpush1.bf16.msra.mxu0 %v1614
        %1637 = vmatprep.subr.bf16.mxu0 0
        %1638 = vmatpush1.bf16.msra.mxu0 %v1615
        %1639 = vmatprep.subr.bf16.mxu0 0
        %1640 = vmatpush1.bf16.msra.mxu0 %v1616
        %1641 = vmatprep.subr.bf16.mxu0 0
        %1642 = vmatpush1.bf16.msra.mxu0 0
        %1643 = vmatprep.subr.bf16.mxu0 0
        %1644 = vmatpush1.bf16.msra.mxu0 0
        %1645 = vmatprep.subr.bf16.mxu0 0
        %1646 = vmatpush1.bf16.msra.mxu0 0
        %1647 = vmatprep.subr.bf16.mxu0 0
        %1648 = vmatpush1.bf16.msra.mxu0 0
        %1649 = vmatprep.subr.bf16.mxu0 0
        %1650 = vmatpush1.bf16.msra.mxu0 0
        %1651 = vmatprep.subr.bf16.mxu0 0
        %1652 = vmatpush1.bf16.msra.mxu0 0
        %1653 = vmatprep.subr.bf16.mxu0 0
        %1654 = vmatpush1.bf16.msra.mxu0 0
        %1655 = vmatprep.subr.bf16.mxu0 0
        %1656 = vmatpush1.bf16.msra.mxu0 0
        %1657 = vmatprep.mubr.bf16.mxu0 0
        %1658 = vmatmul.mubr.bf16.gmra.mrb[0].mxu0 %v1553
        %v1659 = vpop.f32.mrb[0].mxu0
        %v1660 = vadd.f32 0.0, %v1659
        %v1661 = vpop.f32.mrb[0].mxu0
        %v1662 = vpop.f32.mrb[0].mxu0
        %v1663 = vadd.f32 0.0, %v1662
        %v1664 = vpop.f32.mrb[0].mxu0
        %1665 = vmatprep.mubr.bf16.mxu0 0
        %1666 = vmatmul.mubr.bf16.gmra.mrb[0].mxu0 %v1554
        %v1667 = vpop.f32.mrb[0].mxu0
        %v1668 = vadd.f32 0.0, %v1667
        %v1669 = vpop.f32.mrb[0].mxu0
        %v1670 = vpop.f32.mrb[0].mxu0
        %v1671 = vadd.f32 0.0, %v1670
        %v1672 = vpop.f32.mrb[0].mxu0
        %1673 = vmatprep.mubr.bf16.mxu0 0
        %1674 = vmatmul.mubr.bf16.gmra.mrb[0].mxu0 %v1555
        %v1675 = vpop.f32.mrb[0].mxu0
        %v1676 = vadd.f32 0.0, %v1675
        %v1677 = vpop.f32.mrb[0].mxu0
        %v1678 = vpop.f32.mrb[0].mxu0
        %v1679 = vadd.f32 0.0, %v1678
        %v1680 = vpop.f32.mrb[0].mxu0
        %1681 = vmatprep.mubr.bf16.mxu0 0
        %1682 = vmatmul.mubr.bf16.gmra.mrb[0].mxu0 %v1556
        %v1683 = vpop.f32.mrb[0].mxu0
        %v1684 = vadd.f32 0.0, %v1683
        %v1685 = vpop.f32.mrb[0].mxu0
        %v1686 = vpop.f32.mrb[0].mxu0
        %v1687 = vadd.f32 0.0, %v1686
        %v1688 = vpop.f32.mrb[0].mxu0
        %1689 = vmatprep.mubr.bf16.mxu0 0
        %1690 = vmatmul.mubr.bf16.gmra.mrb[0].mxu0 %v1557
        %v1691 = vpop.f32.mrb[0].mxu0
        %v1692 = vadd.f32 0.0, %v1691
        %v1693 = vpop.f32.mrb[0].mxu0
        %v1694 = vpop.f32.mrb[0].mxu0
        %v1695 = vadd.f32 0.0, %v1694
        %v1696 = vpop.f32.mrb[0].mxu0
        %1697 = vmatprep.mubr.bf16.mxu0 0
        %1698 = vmatmul.mubr.bf16.gmra.mrb[0].mxu0 %v1558
        %v1699 = vpop.f32.mrb[0].mxu0
        %v1700 = vadd.f32 0.0, %v1699
        %v1701 = vpop.f32.mrb[0].mxu0
        %v1702 = vpop.f32.mrb[0].mxu0
        %v1703 = vadd.f32 0.0, %v1702
        %v1704 = vpop.f32.mrb[0].mxu0
        %1705 = vmatprep.mubr.bf16.mxu0 0
        %1706 = vmatmul.mubr.bf16.gmra.mrb[0].mxu0 %v1559
        %v1707 = vpop.f32.mrb[0].mxu0
        %v1708 = vadd.f32 0.0, %v1707
        %v1709 = vpop.f32.mrb[0].mxu0
        %v1710 = vpop.f32.mrb[0].mxu0
        %v1711 = vadd.f32 0.0, %v1710
        %v1712 = vpop.f32.mrb[0].mxu0
        %1713 = vmatprep.mubr.bf16.mxu0 0
        %1714 = vmatmul.mubr.bf16.gmra.mrb[0].mxu0 %v1560
        %v1715 = vpop.f32.mrb[0].mxu0
        %v1716 = vadd.f32 0.0, %v1715
        %v1717 = vpop.f32.mrb[0].mxu0
        %v1718 = vpop.f32.mrb[0].mxu0
        %v1719 = vadd.f32 0.0, %v1718
        %v1720 = vpop.f32.mrb[0].mxu0
        %1721 = vdwg.mxu0
        %v1722 = vmul.f32 %v1660, 2.0
        %v1723 = vmul.f32 %v1663, 2.0
        %v1724 = vmul.f32 %v1668, 2.0
        %v1725 = vmul.f32 %v1671, 2.0
        %v1726 = vmul.f32 %v1676, 2.0
        %v1727 = vmul.f32 %v1679, 2.0
        %v1728 = vmul.f32 %v1684, 2.0
        %v1729 = vmul.f32 %v1687, 2.0
        %v1730 = vmul.f32 %v1692, 2.0
        %v1731 = vmul.f32 %v1695, 2.0
        %v1732 = vmul.f32 %v1700, 2.0
        %v1733 = vmul.f32 %v1703, 2.0
        %v1734 = vmul.f32 %v1708, 2.0
        %v1735 = vmul.f32 %v1711, 2.0
        %v1736 = vmul.f32 %v1716, 2.0
        %v1737 = vmul.f32 %v1719, 2.0
        %v1738 = vadd.f32 %v1423, %v1722
        %v1739 = vadd.f32 %v1424, %v1723
        %v1740 = vadd.f32 %v1425, %v1724
        %v1741 = vadd.f32 %v1426, %v1725
        %v1742 = vadd.f32 %v1427, %v1726
        %v1743 = vadd.f32 %v1428, %v1727
        %v1744 = vadd.f32 %v1429, %v1728
        %v1745 = vadd.f32 %v1430, %v1729
        %v1746 = vadd.f32 %v1431, %v1730
        %v1747 = vadd.f32 %v1432, %v1731
        %v1748 = vadd.f32 %v1433, %v1732
        %v1749 = vadd.f32 %v1434, %v1733
        %v1750 = vadd.f32 %v1435, %v1734
        %v1751 = vadd.f32 %v1436, %v1735
        %v1752 = vadd.f32 %v1437, %v1736
        %v1753 = vadd.f32 %v1438, %v1737
        %v1754 = vpack.c.bf16 %v1739, %v1738
        %v1755 = vpack.c.bf16 %v1741, %v1740
        %v1756 = vpack.c.bf16 %v1743, %v1742
        %v1757 = vpack.c.bf16 %v1745, %v1744
        %v1758 = vpack.c.bf16 %v1747, %v1746
        %v1759 = vpack.c.bf16 %v1749, %v1748
        %v1760 = vpack.c.bf16 %v1751, %v1750
        %v1761 = vpack.c.bf16 %v1753, %v1752
        %v1762 = vld [vmem:[#allocation8] sm:$0xf]
        %v1763 = vld [vmem:[#allocation8 + $0x4] sm:$0xf]
        %v1764 = vld [vmem:[#allocation8 + $0x8] sm:$0xf]
        %v1765 = vld [vmem:[#allocation8 + $0xc] sm:$0xf]
        %v1766 = vld [vmem:[#allocation8 + $0x10] sm:$0xf]
        %v1767 = vld [vmem:[#allocation8 + $0x14] sm:$0xf]
        %v1768 = vld [vmem:[#allocation8 + $0x18] sm:$0xf]
        %v1769 = vld [vmem:[#allocation8 + $0x1c] sm:$0xf]
        %v1770 = vld [vmem:[#allocation8 + $0x20] sm:$0xf]
        %v1771 = vld [vmem:[#allocation8 + $0x24] sm:$0xf]
        %v1772 = vld [vmem:[#allocation8 + $0x28] sm:$0xf]
        %v1773 = vld [vmem:[#allocation8 + $0x2c] sm:$0xf]
        %v1774 = vld [vmem:[#allocation8 + $0x30] sm:$0xf]
        %v1775 = vld [vmem:[#allocation8 + $0x34] sm:$0xf]
        %v1776 = vld [vmem:[#allocation8 + $0x38] sm:$0xf]
        %v1777 = vld [vmem:[#allocation8 + $0x3c] sm:$0xf]
        %v1778 = vld [vmem:[%s9 + $0x3] sm:$0x1]
        %v1779 = vlaneseq
        %v1780 = vshrl.u32 %v1779, 7
        %v1781 = vsub.s32 0, %v1780
        %v1782 = vrot.slane %v1778, %v1781
        %v1799 = vunpack.c.l.b16 %v1762
        %v1800 = vunpack.c.l.b16 %v1763
        %v1801 = vunpack.c.l.b16 %v1764
        %v1802 = vunpack.c.l.b16 %v1765
        %v1803 = vunpack.c.l.b16 %v1766
        %v1804 = vunpack.c.l.b16 %v1767
        %v1805 = vunpack.c.l.b16 %v1768
        %v1806 = vunpack.c.l.b16 %v1769
        %v1807 = vunpack.c.l.b16 %v1770
        %v1808 = vunpack.c.l.b16 %v1771
        %v1809 = vunpack.c.l.b16 %v1772
        %v1810 = vunpack.c.l.b16 %v1773
        %v1811 = vunpack.c.l.b16 %v1774
        %v1812 = vunpack.c.l.b16 %v1775
        %v1813 = vunpack.c.l.b16 %v1776
        %v1814 = vunpack.c.l.b16 %v1777
        %v1815 = vpack.c.b16 %v1800, %v1799
        %v1816 = vpack.c.b16 %v1802, %v1801
        %v1817 = vpack.c.b16 %v1804, %v1803
        %v1818 = vpack.c.b16 %v1806, %v1805
        %v1819 = vpack.c.b16 %v1808, %v1807
        %v1820 = vpack.c.b16 %v1810, %v1809
        %v1821 = vpack.c.b16 %v1812, %v1811
        %v1822 = vpack.c.b16 %v1814, %v1813
        %1831 = vmatprep.subr.bf16.mxu0 0
        %1832 = vmatpush1.bf16.msra.mxu0 %v1815
        %1833 = vmatprep.subr.bf16.mxu0 0
        %1834 = vmatpush1.bf16.msra.mxu0 %v1816
        %1835 = vmatprep.subr.bf16.mxu0 0
        %1836 = vmatpush1.bf16.msra.mxu0 %v1817
        %1837 = vmatprep.subr.bf16.mxu0 0
        %1838 = vmatpush1.bf16.msra.mxu0 %v1818
        %1839 = vmatprep.subr.bf16.mxu0 0
        %1840 = vmatpush1.bf16.msra.mxu0 %v1819
        %1841 = vmatprep.subr.bf16.mxu0 0
        %1842 = vmatpush1.bf16.msra.mxu0 %v1820
        %1843 = vmatprep.subr.bf16.mxu0 0
        %1844 = vmatpush1.bf16.msra.mxu0 %v1821
        %1845 = vmatprep.subr.bf16.mxu0 0
        %1846 = vmatpush1.bf16.msra.mxu0 %v1822
        %1847 = vmatprep.subr.bf16.mxu0 0
        %1848 = vmatpush1.bf16.msra.mxu0 0
        %1849 = vmatprep.subr.bf16.mxu0 0
        %1850 = vmatpush1.bf16.msra.mxu0 0
        %1851 = vmatprep.subr.bf16.mxu0 0
        %1852 = vmatpush1.bf16.msra.mxu0 0
        %1853 = vmatprep.subr.bf16.mxu0 0
        %1854 = vmatpush1.bf16.msra.mxu0 0
        %1855 = vmatprep.subr.bf16.mxu0 0
        %1856 = vmatpush1.bf16.msra.mxu0 0
        %1857 = vmatprep.subr.bf16.mxu0 0
        %1858 = vmatpush1.bf16.msra.mxu0 0
        %1859 = vmatprep.subr.bf16.mxu0 0
        %1860 = vmatpush1.bf16.msra.mxu0 0
        %1861 = vmatprep.subr.bf16.mxu0 0
        %1862 = vmatpush1.bf16.msra.mxu0 0
        %1863 = vmatprep.mubr.bf16.mxu0 0
        %1864 = vmatmul.mubr.bf16.gmra.mrb[0].mxu0 %v1754
        %v1865 = vpop.f32.mrb[0].mxu0
        %v1866 = vadd.f32 %v1782, %v1865
        %v1867 = vpop.f32.mrb[0].mxu0
        %v1868 = vpop.f32.mrb[0].mxu0
        %v1869 = vadd.f32 %v1782, %v1868
        %v1870 = vpop.f32.mrb[0].mxu0
        %1871 = vmatprep.mubr.bf16.mxu0 0
        %1872 = vmatmul.mubr.bf16.gmra.mrb[0].mxu0 %v1755
        %v1873 = vpop.f32.mrb[0].mxu0
        %v1874 = vadd.f32 %v1782, %v1873
        %v1875 = vpop.f32.mrb[0].mxu0
        %v1876 = vpop.f32.mrb[0].mxu0
        %v1877 = vadd.f32 %v1782, %v1876
        %v1878 = vpop.f32.mrb[0].mxu0
        %1879 = vmatprep.mubr.bf16.mxu0 0
        %1880 = vmatmul.mubr.bf16.gmra.mrb[0].mxu0 %v1756
        %v1881 = vpop.f32.mrb[0].mxu0
        %v1882 = vadd.f32 %v1782, %v1881
        %v1883 = vpop.f32.mrb[0].mxu0
        %v1884 = vpop.f32.mrb[0].mxu0
        %v1885 = vadd.f32 %v1782, %v1884
        %v1886 = vpop.f32.mrb[0].mxu0
        %1887 = vmatprep.mubr.bf16.mxu0 0
        %1888 = vmatmul.mubr.bf16.gmra.mrb[0].mxu0 %v1757
        %v1889 = vpop.f32.mrb[0].mxu0
        %v1890 = vadd.f32 %v1782, %v1889
        %v1891 = vpop.f32.mrb[0].mxu0
        %v1892 = vpop.f32.mrb[0].mxu0
        %v1893 = vadd.f32 %v1782, %v1892
        %v1894 = vpop.f32.mrb[0].mxu0
        %1895 = vmatprep.mubr.bf16.mxu0 0
        %1896 = vmatmul.mubr.bf16.gmra.mrb[0].mxu0 %v1758
        %v1897 = vpop.f32.mrb[0].mxu0
        %v1898 = vadd.f32 %v1782, %v1897
        %v1899 = vpop.f32.mrb[0].mxu0
        %v1900 = vpop.f32.mrb[0].mxu0
        %v1901 = vadd.f32 %v1782, %v1900
        %v1902 = vpop.f32.mrb[0].mxu0
        %1903 = vmatprep.mubr.bf16.mxu0 0
        %1904 = vmatmul.mubr.bf16.gmra.mrb[0].mxu0 %v1759
        %v1905 = vpop.f32.mrb[0].mxu0
        %v1906 = vadd.f32 %v1782, %v1905
        %v1907 = vpop.f32.mrb[0].mxu0
        %v1908 = vpop.f32.mrb[0].mxu0
        %v1909 = vadd.f32 %v1782, %v1908
        %v1910 = vpop.f32.mrb[0].mxu0
        %1911 = vmatprep.mubr.bf16.mxu0 0
        %1912 = vmatmul.mubr.bf16.gmra.mrb[0].mxu0 %v1760
        %v1913 = vpop.f32.mrb[0].mxu0
        %v1914 = vadd.f32 %v1782, %v1913
        %v1915 = vpop.f32.mrb[0].mxu0
        %v1916 = vpop.f32.mrb[0].mxu0
        %v1917 = vadd.f32 %v1782, %v1916
        %v1918 = vpop.f32.mrb[0].mxu0
        %1919 = vmatprep.mubr.bf16.mxu0 0
        %1920 = vmatmul.mubr.bf16.gmra.mrb[0].mxu0 %v1761
        %v1921 = vpop.f32.mrb[0].mxu0
        %v1922 = vadd.f32 %v1782, %v1921
        %v1923 = vpop.f32.mrb[0].mxu0
        %v1924 = vpop.f32.mrb[0].mxu0
        %v1925 = vadd.f32 %v1782, %v1924
        %v1926 = vpop.f32.mrb[0].mxu0
        %1927 = vdwg.mxu0
        %v1928 = vmax.f32 %v1866, 0.0
        %v1929 = vmax.f32 %v1869, 0.0
        %v1930 = vmax.f32 %v1874, 0.0
        %v1931 = vmax.f32 %v1877, 0.0
        %v1932 = vmax.f32 %v1882, 0.0
        %v1933 = vmax.f32 %v1885, 0.0
        %v1934 = vmax.f32 %v1890, 0.0
        %v1935 = vmax.f32 %v1893, 0.0
        %v1936 = vmax.f32 %v1898, 0.0
        %v1937 = vmax.f32 %v1901, 0.0
        %v1938 = vmax.f32 %v1906, 0.0
        %v1939 = vmax.f32 %v1909, 0.0
        %v1940 = vmax.f32 %v1914, 0.0
        %v1941 = vmax.f32 %v1917, 0.0
        %v1942 = vmax.f32 %v1922, 0.0
        %v1943 = vmax.f32 %v1925, 0.0
        %v1944 = vpack.c.bf16 %v1929, %v1928
        %v1945 = vpack.c.bf16 %v1931, %v1930
        %v1946 = vpack.c.bf16 %v1933, %v1932
        %v1947 = vpack.c.bf16 %v1935, %v1934
        %v1948 = vpack.c.bf16 %v1937, %v1936
        %v1949 = vpack.c.bf16 %v1939, %v1938
        %v1950 = vpack.c.bf16 %v1941, %v1940
        %v1951 = vpack.c.bf16 %v1943, %v1942
        %v1952 = vld [vmem:[#allocation10] sm:$0xf]
        %v1953 = vld [vmem:[#allocation10 + $0x4] sm:$0xf]
        %v1954 = vld [vmem:[#allocation10 + $0x8] sm:$0xf]
        %v1955 = vld [vmem:[#allocation10 + $0xc] sm:$0xf]
        %v1956 = vld [vmem:[#allocation10 + $0x10] sm:$0xf]
        %v1957 = vld [vmem:[#allocation10 + $0x14] sm:$0xf]
        %v1958 = vld [vmem:[#allocation10 + $0x18] sm:$0xf]
        %v1959 = vld [vmem:[#allocation10 + $0x1c] sm:$0xf]
        %v1960 = vld [vmem:[#allocation10 + $0x20] sm:$0xf]
        %v1961 = vld [vmem:[#allocation10 + $0x24] sm:$0xf]
        %v1962 = vld [vmem:[#allocation10 + $0x28] sm:$0xf]
        %v1963 = vld [vmem:[#allocation10 + $0x2c] sm:$0xf]
        %v1964 = vld [vmem:[#allocation10 + $0x30] sm:$0xf]
        %v1965 = vld [vmem:[#allocation10 + $0x34] sm:$0xf]
        %v1966 = vld [vmem:[#allocation10 + $0x38] sm:$0xf]
        %v1967 = vld [vmem:[#allocation10 + $0x3c] sm:$0xf]
        %v1968 = vld [vmem:[%s9 + $0x4] sm:$0x1]
        %v1969 = vlaneseq
        %v1970 = vshrl.u32 %v1969, 7
        %v1971 = vsub.s32 0, %v1970
        %v1972 = vrot.slane %v1968, %v1971
        %v1989 = vunpack.c.l.b16 %v1952
        %v1990 = vunpack.c.l.b16 %v1953
        %v1991 = vunpack.c.l.b16 %v1954
        %v1992 = vunpack.c.l.b16 %v1955
        %v1993 = vunpack.c.l.b16 %v1956
        %v1994 = vunpack.c.l.b16 %v1957
        %v1995 = vunpack.c.l.b16 %v1958
        %v1996 = vunpack.c.l.b16 %v1959
        %v1997 = vunpack.c.l.b16 %v1960
        %v1998 = vunpack.c.l.b16 %v1961
        %v1999 = vunpack.c.l.b16 %v1962
        %v2000 = vunpack.c.l.b16 %v1963
        %v2001 = vunpack.c.l.b16 %v1964
        %v2002 = vunpack.c.l.b16 %v1965
        %v2003 = vunpack.c.l.b16 %v1966
        %v2004 = vunpack.c.l.b16 %v1967
        %v2005 = vpack.c.b16 %v1990, %v1989
        %v2006 = vpack.c.b16 %v1992, %v1991
        %v2007 = vpack.c.b16 %v1994, %v1993
        %v2008 = vpack.c.b16 %v1996, %v1995
        %v2009 = vpack.c.b16 %v1998, %v1997
        %v2010 = vpack.c.b16 %v2000, %v1999
        %v2011 = vpack.c.b16 %v2002, %v2001
        %v2012 = vpack.c.b16 %v2004, %v2003
        %2021 = vmatprep.subr.bf16.mxu0 0
        %2022 = vmatpush1.bf16.msra.mxu0 %v2005
        %2023 = vmatprep.subr.bf16.mxu0 0
        %2024 = vmatpush1.bf16.msra.mxu0 %v2006
        %2025 = vmatprep.subr.bf16.mxu0 0
        %2026 = vmatpush1.bf16.msra.mxu0 %v2007
        %2027 = vmatprep.subr.bf16.mxu0 0
        %2028 = vmatpush1.bf16.msra.mxu0 %v2008
        %2029 = vmatprep.subr.bf16.mxu0 0
        %2030 = vmatpush1.bf16.msra.mxu0 %v2009
        %2031 = vmatprep.subr.bf16.mxu0 0
        %2032 = vmatpush1.bf16.msra.mxu0 %v2010
        %2033 = vmatprep.subr.bf16.mxu0 0
        %2034 = vmatpush1.bf16.msra.mxu0 %v2011
        %2035 = vmatprep.subr.bf16.mxu0 0
        %2036 = vmatpush1.bf16.msra.mxu0 %v2012
        %2037 = vmatprep.subr.bf16.mxu0 0
        %2038 = vmatpush1.bf16.msra.mxu0 0
        %2039 = vmatprep.subr.bf16.mxu0 0
        %2040 = vmatpush1.bf16.msra.mxu0 0
        %2041 = vmatprep.subr.bf16.mxu0 0
        %2042 = vmatpush1.bf16.msra.mxu0 0
        %2043 = vmatprep.subr.bf16.mxu0 0
        %2044 = vmatpush1.bf16.msra.mxu0 0
        %2045 = vmatprep.subr.bf16.mxu0 0
        %2046 = vmatpush1.bf16.msra.mxu0 0
        %2047 = vmatprep.subr.bf16.mxu0 0
        %2048 = vmatpush1.bf16.msra.mxu0 0
        %2049 = vmatprep.subr.bf16.mxu0 0
        %2050 = vmatpush1.bf16.msra.mxu0 0
        %2051 = vmatprep.subr.bf16.mxu0 0
        %2052 = vmatpush1.bf16.msra.mxu0 0
        %2053 = vmatprep.mubr.bf16.mxu0 0
        %2054 = vmatmul.mubr.bf16.gmra.mrb[0].mxu0 %v1944
        %v2055 = vpop.f32.mrb[0].mxu0
        %v2056 = vadd.f32 %v1972, %v2055
        %v2057 = vpop.f32.mrb[0].mxu0
        %v2058 = vpop.f32.mrb[0].mxu0
        %v2059 = vadd.f32 %v1972, %v2058
        %v2060 = vpop.f32.mrb[0].mxu0
        %2061 = vmatprep.mubr.bf16.mxu0 0
        %2062 = vmatmul.mubr.bf16.gmra.mrb[0].mxu0 %v1945
        %v2063 = vpop.f32.mrb[0].mxu0
        %v2064 = vadd.f32 %v1972, %v2063
        %v2065 = vpop.f32.mrb[0].mxu0
        %v2066 = vpop.f32.mrb[0].mxu0
        %v2067 = vadd.f32 %v1972, %v2066
        %v2068 = vpop.f32.mrb[0].mxu0
        %2069 = vmatprep.mubr.bf16.mxu0 0
        %2070 = vmatmul.mubr.bf16.gmra.mrb[0].mxu0 %v1946
        %v2071 = vpop.f32.mrb[0].mxu0
        %v2072 = vadd.f32 %v1972, %v2071
        %v2073 = vpop.f32.mrb[0].mxu0
        %v2074 = vpop.f32.mrb[0].mxu0
        %v2075 = vadd.f32 %v1972, %v2074
        %v2076 = vpop.f32.mrb[0].mxu0
        %2077 = vmatprep.mubr.bf16.mxu0 0
        %2078 = vmatmul.mubr.bf16.gmra.mrb[0].mxu0 %v1947
        %v2079 = vpop.f32.mrb[0].mxu0
        %v2080 = vadd.f32 %v1972, %v2079
        %v2081 = vpop.f32.mrb[0].mxu0
        %v2082 = vpop.f32.mrb[0].mxu0
        %v2083 = vadd.f32 %v1972, %v2082
        %v2084 = vpop.f32.mrb[0].mxu0
        %2085 = vmatprep.mubr.bf16.mxu0 0
        %2086 = vmatmul.mubr.bf16.gmra.mrb[0].mxu0 %v1948
        %v2087 = vpop.f32.mrb[0].mxu0
        %v2088 = vadd.f32 %v1972, %v2087
        %v2089 = vpop.f32.mrb[0].mxu0
        %v2090 = vpop.f32.mrb[0].mxu0
        %v2091 = vadd.f32 %v1972, %v2090
        %v2092 = vpop.f32.mrb[0].mxu0
        %2093 = vmatprep.mubr.bf16.mxu0 0
        %2094 = vmatmul.mubr.bf16.gmra.mrb[0].mxu0 %v1949
        %v2095 = vpop.f32.mrb[0].mxu0
        %v2096 = vadd.f32 %v1972, %v2095
        %v2097 = vpop.f32.mrb[0].mxu0
        %v2098 = vpop.f32.mrb[0].mxu0
        %v2099 = vadd.f32 %v1972, %v2098
        %v2100 = vpop.f32.mrb[0].mxu0
        %2101 = vmatprep.mubr.bf16.mxu0 0
        %2102 = vmatmul.mubr.bf16.gmra.mrb[0].mxu0 %v1950
        %v2103 = vpop.f32.mrb[0].mxu0
        %v2104 = vadd.f32 %v1972, %v2103
        %v2105 = vpop.f32.mrb[0].mxu0
        %v2106 = vpop.f32.mrb[0].mxu0
        %v2107 = vadd.f32 %v1972, %v2106
        %v2108 = vpop.f32.mrb[0].mxu0
        %2109 = vmatprep.mubr.bf16.mxu0 0
        %2110 = vmatmul.mubr.bf16.gmra.mrb[0].mxu0 %v1951
        %v2111 = vpop.f32.mrb[0].mxu0
        %v2112 = vadd.f32 %v1972, %v2111
        %v2113 = vpop.f32.mrb[0].mxu0
        %v2114 = vpop.f32.mrb[0].mxu0
        %v2115 = vadd.f32 %v1972, %v2114
        %v2116 = vpop.f32.mrb[0].mxu0
        %2117 = vdwg.mxu0
        %v2118 = vmax.f32 %v2056, 0.0
        %v2119 = vmax.f32 %v2059, 0.0
        %v2120 = vmax.f32 %v2064, 0.0
        %v2121 = vmax.f32 %v2067, 0.0
        %v2122 = vmax.f32 %v2072, 0.0
        %v2123 = vmax.f32 %v2075, 0.0
        %v2124 = vmax.f32 %v2080, 0.0
        %v2125 = vmax.f32 %v2083, 0.0
        %v2126 = vmax.f32 %v2088, 0.0
        %v2127 = vmax.f32 %v2091, 0.0
        %v2128 = vmax.f32 %v2096, 0.0
        %v2129 = vmax.f32 %v2099, 0.0
        %v2130 = vmax.f32 %v2104, 0.0
        %v2131 = vmax.f32 %v2107, 0.0
        %v2132 = vmax.f32 %v2112, 0.0
        %v2133 = vmax.f32 %v2115, 0.0
        %v2134 = vld [vmem:[%s8] sm:$0x1]
        %v2136 = vlaneseq
        %v2137 = vshrl.u32 %v2136, 7
        %v2138 = vsub.s32 0, %v2137
        %v2139 = vrot.slane %v2134, %v2138
        %v2141 = vmul.f32 %v2118, %v2139
        %v2142 = vmul.f32 %v2119, %v2139
        %v2143 = vmul.f32 %v2120, %v2139
        %v2144 = vmul.f32 %v2121, %v2139
        %v2145 = vmul.f32 %v2122, %v2139
        %v2146 = vmul.f32 %v2123, %v2139
        %v2147 = vmul.f32 %v2124, %v2139
        %v2148 = vmul.f32 %v2125, %v2139
        %v2149 = vmul.f32 %v2126, %v2139
        %v2150 = vmul.f32 %v2127, %v2139
        %v2151 = vmul.f32 %v2128, %v2139
        %v2152 = vmul.f32 %v2129, %v2139
        %v2153 = vmul.f32 %v2130, %v2139
        %v2154 = vmul.f32 %v2131, %v2139
        %v2155 = vmul.f32 %v2132, %v2139
        %v2156 = vmul.f32 %v2133, %v2139
        %2157 = vadd.xlane.f32.xlu0 %v2141
        %v2158 = vpop.xlane.xlu0 %2157
        %2159 = vadd.xlane.f32.xlu0 %v2142
        %v2160 = vpop.xlane.xlu0 %2159
        %2161 = vadd.xlane.f32.xlu0 %v2143
        %v2162 = vpop.xlane.xlu0 %2161
        %2163 = vadd.xlane.f32.xlu0 %v2144
        %v2164 = vpop.xlane.xlu0 %2163
        %2165 = vadd.xlane.f32.xlu0 %v2145
        %v2166 = vpop.xlane.xlu0 %2165
        %2167 = vadd.xlane.f32.xlu0 %v2146
        %v2168 = vpop.xlane.xlu0 %2167
        %2169 = vadd.xlane.f32.xlu0 %v2147
        %v2170 = vpop.xlane.xlu0 %2169
        %2171 = vadd.xlane.f32.xlu0 %v2148
        %v2172 = vpop.xlane.xlu0 %2171
        %2173 = vadd.xlane.f32.xlu0 %v2149
        %v2174 = vpop.xlane.xlu0 %2173
        %2175 = vadd.xlane.f32.xlu0 %v2150
        %v2176 = vpop.xlane.xlu0 %2175
        %2177 = vadd.xlane.f32.xlu0 %v2151
        %v2178 = vpop.xlane.xlu0 %2177
        %2179 = vadd.xlane.f32.xlu0 %v2152
        %v2180 = vpop.xlane.xlu0 %2179
        %2181 = vadd.xlane.f32.xlu0 %v2153
        %v2182 = vpop.xlane.xlu0 %2181
        %2183 = vadd.xlane.f32.xlu0 %v2154
        %v2184 = vpop.xlane.xlu0 %2183
        %2185 = vadd.xlane.f32.xlu0 %v2155
        %v2186 = vpop.xlane.xlu0 %2185
        %2187 = vadd.xlane.f32.xlu0 %v2156
        %v2188 = vpop.xlane.xlu0 %2187
        %s2189 = sld [smem:[#allocation2]]
        %v2190 = vstv %s2189
        %v2191 = vadd.f32 %v2158, %v2190
        %v2192 = vadd.f32 %v2160, %v2190
        %v2193 = vadd.f32 %v2162, %v2190
        %v2194 = vadd.f32 %v2164, %v2190
        %v2195 = vadd.f32 %v2166, %v2190
        %v2196 = vadd.f32 %v2168, %v2190
        %v2197 = vadd.f32 %v2170, %v2190
        %v2198 = vadd.f32 %v2172, %v2190
        %v2199 = vadd.f32 %v2174, %v2190
        %v2200 = vadd.f32 %v2176, %v2190
        %v2201 = vadd.f32 %v2178, %v2190
        %v2202 = vadd.f32 %v2180, %v2190
        %v2203 = vadd.f32 %v2182, %v2190
        %v2204 = vadd.f32 %v2184, %v2190
        %v2205 = vadd.f32 %v2186, %v2190
        %v2206 = vadd.f32 %v2188, %v2190
        %v2207 = vxor.u32 %v2191, 2147483648
        %v2208 = vxor.u32 %v2192, 2147483648
        %v2209 = vxor.u32 %v2193, 2147483648
        %v2210 = vxor.u32 %v2194, 2147483648
        %v2211 = vxor.u32 %v2195, 2147483648
        %v2212 = vxor.u32 %v2196, 2147483648
        %v2213 = vxor.u32 %v2197, 2147483648
        %v2214 = vxor.u32 %v2198, 2147483648
        %v2215 = vxor.u32 %v2199, 2147483648
        %v2216 = vxor.u32 %v2200, 2147483648
        %v2217 = vxor.u32 %v2201, 2147483648
        %v2218 = vxor.u32 %v2202, 2147483648
        %v2219 = vxor.u32 %v2203, 2147483648
        %v2220 = vxor.u32 %v2204, 2147483648
        %v2221 = vxor.u32 %v2205, 2147483648
        %v2222 = vxor.u32 %v2206, 2147483648
        %v2223 = vmul.f32 %v2207, 1.442695
        %v2224 = vpow.pop %v2223
        %v2225 = vmul.f32 %v2208, 1.442695
        %v2226 = vpow.pop %v2225
        %v2227 = vmul.f32 %v2209, 1.442695
        %v2228 = vpow.pop %v2227
        %v2229 = vmul.f32 %v2210, 1.442695
        %v2230 = vpow.pop %v2229
        %v2231 = vmul.f32 %v2211, 1.442695
        %v2232 = vpow.pop %v2231
        %v2233 = vmul.f32 %v2212, 1.442695
        %v2234 = vpow.pop %v2233
        %v2235 = vmul.f32 %v2213, 1.442695
        %v2236 = vpow.pop %v2235
        %v2237 = vmul.f32 %v2214, 1.442695
        %v2238 = vpow.pop %v2237
        %v2239 = vmul.f32 %v2215, 1.442695
        %v2240 = vpow.pop %v2239
        %v2241 = vmul.f32 %v2216, 1.442695
        %v2242 = vpow.pop %v2241
        %v2243 = vmul.f32 %v2217, 1.442695
        %v2244 = vpow.pop %v2243
        %v2245 = vmul.f32 %v2218, 1.442695
        %v2246 = vpow.pop %v2245
        %v2247 = vmul.f32 %v2219, 1.442695
        %v2248 = vpow.pop %v2247
        %v2249 = vmul.f32 %v2220, 1.442695
        %v2250 = vpow.pop %v2249
        %v2251 = vmul.f32 %v2221, 1.442695
        %v2252 = vpow.pop %v2251
        %v2253 = vmul.f32 %v2222, 1.442695
        %v2254 = vpow.pop %v2253
        %v2255 = vadd.f32 %v2224, 1.0
        %v2256 = vadd.f32 %v2226, 1.0
        %v2257 = vadd.f32 %v2228, 1.0
        %v2258 = vadd.f32 %v2230, 1.0
        %v2259 = vadd.f32 %v2232, 1.0
        %v2260 = vadd.f32 %v2234, 1.0
        %v2261 = vadd.f32 %v2236, 1.0
        %v2262 = vadd.f32 %v2238, 1.0
        %v2263 = vadd.f32 %v2240, 1.0
        %v2264 = vadd.f32 %v2242, 1.0
        %v2265 = vadd.f32 %v2244, 1.0
        %v2266 = vadd.f32 %v2246, 1.0
        %v2267 = vadd.f32 %v2248, 1.0
        %v2268 = vadd.f32 %v2250, 1.0
        %v2269 = vadd.f32 %v2252, 1.0
        %v2270 = vadd.f32 %v2254, 1.0
        %v2271 = vrcp.pop %v2255
        %v2272 = vmul.f32 1.0, %v2271
        %v2273 = vrcp.pop %v2256
        %v2274 = vmul.f32 1.0, %v2273
        %v2275 = vrcp.pop %v2257
        %v2276 = vmul.f32 1.0, %v2275
        %v2277 = vrcp.pop %v2258
        %v2278 = vmul.f32 1.0, %v2277
        %v2279 = vrcp.pop %v2259
        %v2280 = vmul.f32 1.0, %v2279
        %v2281 = vrcp.pop %v2260
        %v2282 = vmul.f32 1.0, %v2281
        %v2283 = vrcp.pop %v2261
        %v2284 = vmul.f32 1.0, %v2283
        %v2285 = vrcp.pop %v2262
        %v2286 = vmul.f32 1.0, %v2285
        %v2287 = vrcp.pop %v2263
        %v2288 = vmul.f32 1.0, %v2287
        %v2289 = vrcp.pop %v2264
        %v2290 = vmul.f32 1.0, %v2289
        %v2291 = vrcp.pop %v2265
        %v2292 = vmul.f32 1.0, %v2291
        %v2293 = vrcp.pop %v2266
        %v2294 = vmul.f32 1.0, %v2293
        %v2295 = vrcp.pop %v2267
        %v2296 = vmul.f32 1.0, %v2295
        %v2297 = vrcp.pop %v2268
        %v2298 = vmul.f32 1.0, %v2297
        %v2299 = vrcp.pop %v2269
        %v2300 = vmul.f32 1.0, %v2299
        %v2301 = vrcp.pop %v2270
        %v2302 = vmul.f32 1.0, %v2301
        %v2303 = vmul.f32 %v2272, 5.0
        %v2304 = vmul.f32 %v2274, 5.0
        %v2305 = vmul.f32 %v2276, 5.0
        %v2306 = vmul.f32 %v2278, 5.0
        %v2307 = vmul.f32 %v2280, 5.0
        %v2308 = vmul.f32 %v2282, 5.0
        %v2309 = vmul.f32 %v2284, 5.0
        %v2310 = vmul.f32 %v2286, 5.0
        %v2311 = vmul.f32 %v2288, 5.0
        %v2312 = vmul.f32 %v2290, 5.0
        %v2313 = vmul.f32 %v2292, 5.0
        %v2314 = vmul.f32 %v2294, 5.0
        %v2315 = vmul.f32 %v2296, 5.0
        %v2316 = vmul.f32 %v2298, 5.0
        %v2317 = vmul.f32 %v2300, 5.0
        %v2318 = vmul.f32 %v2302, 5.0
        %v2319 = vadd.f32 %v2303, 0.0
        %v2320 = vadd.f32 %v2304, 0.0
        %v2321 = vadd.f32 %v2305, 0.0
        %v2322 = vadd.f32 %v2306, 0.0
        %v2323 = vadd.f32 %v2307, 0.0
        %v2324 = vadd.f32 %v2308, 0.0
        %v2325 = vadd.f32 %v2309, 0.0
        %v2326 = vadd.f32 %v2310, 0.0
        %v2327 = vadd.f32 %v2311, 0.0
        %v2328 = vadd.f32 %v2312, 0.0
        %v2329 = vadd.f32 %v2313, 0.0
        %v2330 = vadd.f32 %v2314, 0.0
        %v2331 = vadd.f32 %v2315, 0.0
        %v2332 = vadd.f32 %v2316, 0.0
        %v2333 = vadd.f32 %v2317, 0.0
        %v2334 = vadd.f32 %v2318, 0.0
        %vm2335 = vcmask 7168
        %2336 = vst.msk [vmem:[%s489] sm:$0xff] %vm2335, %v2319
        %2337 = vst.msk [vmem:[%s489 + $0x8] sm:$0xff] %vm2335, %v2320
        %2338 = vst.msk [vmem:[%s489 + $0x10] sm:$0xff] %vm2335, %v2321
        %2339 = vst.msk [vmem:[%s489 + $0x18] sm:$0xff] %vm2335, %v2322
        %2340 = vst.msk [vmem:[%s489 + $0x20] sm:$0xff] %vm2335, %v2323
        %2341 = vst.msk [vmem:[%s489 + $0x28] sm:$0xff] %vm2335, %v2324
        %2342 = vst.msk [vmem:[%s489 + $0x30] sm:$0xff] %vm2335, %v2325
        %2343 = vst.msk [vmem:[%s489 + $0x38] sm:$0xff] %vm2335, %v2326
        %2344 = vst.msk [vmem:[%s489 + $0x40] sm:$0xff] %vm2335, %v2327
        %2345 = vst.msk [vmem:[%s489 + $0x48] sm:$0xff] %vm2335, %v2328
        %2346 = vst.msk [vmem:[%s489 + $0x50] sm:$0xff] %vm2335, %v2329
        %2347 = vst.msk [vmem:[%s489 + $0x58] sm:$0xff] %vm2335, %v2330
        %2348 = vst.msk [vmem:[%s489 + $0x60] sm:$0xff] %vm2335, %v2331
        %2349 = vst.msk [vmem:[%s489 + $0x68] sm:$0xff] %vm2335, %v2332
        %2350 = vst.msk [vmem:[%s489 + $0x70] sm:$0xff] %vm2335, %v2333
        %2351 = vst.msk [vmem:[%s489 + $0x78] sm:$0xff] %vm2335, %v2334
        %s2352 = smul.u32 16, %s28
        %p2353 = scmp.lt.s32.totalorder %s2352, 31
        %s2354 = scalar_select %p2353, %s2352, 31
        %s2355 = smul.addr %s2354, 8
        %s2356 = scalar_lea.vmem %s11, %s2355
        // Predicated region
        $region85: #{tpu_custom_call.1} parent=63 // pred_check
          %p2357 = pneg %p287
        $region86: #{tpu_custom_call.1} parent=63 // pred_check_branch
          %2359 = sbr.rel (%p2357) target = $region88
        $region87: #{tpu_custom_call.1} parent=63 // pred_region
          %s2360 = smul.u32 16, %s28
        $region88: #{tpu_custom_call.1} parent=63 // pred_fallthru
          _
      $region64: #{tpu_custom_call.1} parent=5 // pred_fallthru
        _
      %p2361 = scmp.le.s32.totalorder 2, %s23
      // Predicated region
      $region89: #{tpu_custom_call.1} parent=5 // pred_check
        %p2362 = pneg %p2361
      $region90: #{tpu_custom_call.1} parent=5 // pred_check_branch
        %2364 = sbr.rel (%p2362) target = $region92
      $region91: #{tpu_custom_call.1} parent=5 // pred_region
        %s2365 = ssub.s32 %s23, 2
        // Predicated region
        $region93: #{tpu_custom_call.1} parent=91 // pred_check
          %p2366 = pneg %p293
        $region94: #{tpu_custom_call.1} parent=91 // pred_check_branch
          %2368 = sbr.rel (%p2366) target = $region96
        $region95: #{tpu_custom_call.1} parent=91 // pred_region
          %s2369 = smul.u32 16, %s29
          %p2370 = scmp.lt.s32.totalorder %s2369, 31
          %s2371 = scalar_select %p2370, %s2369, 31
          %s2372 = smul.addr %s2371, 8
          %s2373 = scalar_lea.vmem %s11, %s2372
        $region96: #{tpu_custom_call.1} parent=91 // pred_fallthru
          _
      $region92: #{tpu_custom_call.1} parent=5 // pred_fallthru
        _
    $region6: #{tpu_custom_call.1} parent=1 // loop_footer
      %s27 = sadd.s32 1, %s23
    $region7: #{tpu_custom_call.1} parent=1 // loop_footer_branch
      %22 = sbr.rel target = $region3
    $region8: #{tpu_custom_call.1} parent=1 // loop_exit
      _
    %2374 = vsyncpa [#allocation4], 1
    %s2375 = scalar_lea.sflag [#allocation4], 1
    %2376 = vsyncpa %s2375, 1
    %2377 = vsyncpa [#allocation6], 1
    %2378 = vsyncpa [#allocation9], 1

</llo_original>
